<compile_context>
chip_gen: v6e
topology: v6e:2x2x1
jax: 0.10.0
libtpu: 0.0.40
codegen_flags: <defaults>
</compile_context>

<pallas_src>
import functools

import jax
import jax.numpy as jnp
import numpy as np
from jax.experimental import pallas as pl
from jax.experimental.pallas import tpu as pltpu

_EPS = 1e-5
_VMEM_LIMIT = 48 * 1024 * 1024


# --------------------------------------------------------------------------- #
# Pass 1: 3x3x3 conv (banded-W matmuls) + per-tile partial IN statistics
# --------------------------------------------------------------------------- #
def _conv_stats_kernel(xt_ref, wb_ref, conv_ref, stats_ref, acc_ref,
                       *, TD, H, W, Cin, Cout):
    """One (sample, d-tile) grid step.

    xt_ref   : (TD+2, H+2, (W+2)*Cin)  zero-padded input tile (halo of 1 in d,h;
                                       W halo folded into the fused lane axis)
    wb_ref   : (9, (W+2)*Cin, W*Cout)  banded conv weights, one per (kd, kh)
    conv_ref : (TD*H, W*Cout)          conv output tile (lane-dense)
    stats_ref: (2, W*Cout)             row 0: sum, row 1: sum of squares
    acc_ref  : (TD*H, W*Cout) f32      VMEM scratch accumulator
    """
    Kw = (W + 2) * Cin

    tap = 0
    for kd in range(3):
        for kh in range(3):
            # Sublane-offset slice straight from the ref (no whole-volume copy);
            # lanes (fused W*Cin) stay untouched -> no lane relayout.
            slab = xt_ref[pl.ds(kd, TD), pl.ds(kh, H), :]
            slab = slab.reshape(TD * H, Kw).astype(jnp.float32)
            contrib = jnp.dot(slab, wb_ref[tap],
                              preferred_element_type=jnp.float32)
            if tap == 0:
                acc_ref[...] = contrib          # first tap: plain store
            else:
                acc_ref[...] += contrib         # later taps: accumulate
            tap += 1

    acc = acc_ref[...]
    conv_ref[...] = acc.astype(conv_ref.dtype)
    # Partial InstanceNorm statistics for this tile (f32, reduced over rows only;
    # the tiny cross-tile / cross-W reduction happens in the wrapper).
    stats_ref[...] = jnp.concatenate(
        [jnp.sum(acc, axis=0, keepdims=True),
         jnp.sum(acc * acc, axis=0, keepdims=True)], axis=0)


# --------------------------------------------------------------------------- #
# Pass 2: normalize + affine + residual + ReLU (pure lane-dense elementwise)
# --------------------------------------------------------------------------- #
def _norm_residual_relu_kernel(conv_ref, res_ref, scale_ref, shift_ref, o_ref):
    """conv_ref/res_ref/o_ref: (TD*H, W*C); scale_ref/shift_ref: (1, W*C)."""
    y = (conv_ref[...].astype(jnp.float32) * scale_ref[...]
         + shift_ref[...]
         + res_ref[...].astype(jnp.float32))
    o_ref[...] = jnp.maximum(y, 0.0).astype(o_ref.dtype)


# --------------------------------------------------------------------------- #
# Wrapper
# --------------------------------------------------------------------------- #
def _pick_d_tile(D, H, W, C, budget_bytes=32 << 20):
    """Largest divisor of D whose per-step working set fits the VMEM budget."""
    wb_bytes = 4 * 9 * (W + 2) * C * W * C
    best = 1
    for td in range(1, D + 1):
        if D % td:
            continue
        per_step = 4 * ((td + 2) * (H + 2) * (W + 2) * C      # input tile
                        + 2 * td * H * W * C)                 # conv tile + acc
        if wb_bytes + 2 * per_step <= budget_bytes:           # double-buffered
            best = td
    return best


def resblock_forward(x_ncdhw, conv_w, gamma, beta, *, d_tile=None):
    """x_ncdhw: (N, C, D, H, W) f32; conv_w: (Cout, Cin, 3, 3, 3); gamma/beta: (Cout,).
    Returns (N, Cout, D, H, W), matching the PyTorch ResBlock forward."""
    N, Cin, D, H, W = x_ncdhw.shape
    Cout = conv_w.shape[0]
    assert Cin == Cout, "ResBlock with downsample=None requires inplanes == planes"

    TD = _pick_d_tile(D, H, W, Cin) if d_tile is None else d_tile
    assert D % TD == 0, f"d_tile {TD} must divide D {D}"
    n_dt = D // TD
    Kw = (W + 2) * Cin          # contraction width per (kd, kh)
    Wc = W * Cout               # lane-dense output width
    TDH = TD * H

    # ---- layout prep (jit the wrapper so XLA fuses these passes) ------------
    x = jnp.transpose(x_ncdhw, (0, 2, 3, 4, 1))                       # NDHWC
    xpad = jnp.pad(x, ((0, 0), (1, 1), (1, 1), (1, 1), (0, 0)))
    xpad = xpad.reshape(N, D + 2, H + 2, Kw)                          # fuse (W+2, Cin)
    # d-tiles with a 1-plane halo on each side (non-overlapping BlockSpecs).
    d_idx = jnp.arange(n_dt)[:, None] * TD + jnp.arange(TD + 2)[None, :]
    xt = xpad[:, d_idx]                                               # (N, n_dt, TD+2, H+2, Kw)
    x_res = x.reshape(N, n_dt, TDH, W * Cin)                          # residual, free reshape

    # ---- banded weights: fold (kw, Cin) into the contraction ----------------
    w_t = jnp.transpose(conv_w, (2, 3, 4, 1, 0)).astype(jnp.float32)  # (kd,kh,kw,Cin,Cout)
    band = (jnp.arange(W + 2)[None, :, None] - jnp.arange(W)[None, None, :]
            == jnp.arange(3)[:, None, None]).astype(jnp.float32)      # (3, W+2, W)
    wb = jnp.einsum('kpw,dhkio->dhpiwo', band, w_t).reshape(9, Kw, Wc)

    # ---- pass 1: conv + partial statistics ----------------------------------
    kern1 = functools.partial(_conv_stats_kernel, TD=TD, H=H, W=W, Cin=Cin, Cout=Cout)
    conv_out, stats = pl.pallas_call(
        kern1,
        out_shape=(jax.ShapeDtypeStruct((N, n_dt, TDH, Wc), jnp.float32),
                   jax.ShapeDtypeStruct((N, n_dt, 2, Wc), jnp.float32)),
        grid_spec=pltpu.PrefetchScalarGridSpec(
            num_scalar_prefetch=0,
            grid=(N, n_dt),
            in_specs=[
                pl.BlockSpec((pl.Squeezed(), pl.Squeezed(), TD + 2, H + 2, Kw),
                             lambda n, t: (n, t, 0, 0, 0)),
                pl.BlockSpec((9, Kw, Wc), lambda n, t: (0, 0, 0)),     # resident weights
            ],
            out_specs=[
                pl.BlockSpec((pl.Squeezed(), pl.Squeezed(), TDH, Wc),
                             lambda n, t: (n, t, 0, 0)),
                pl.BlockSpec((pl.Squeezed(), pl.Squeezed(), 2, Wc),
                             lambda n, t: (n, t, 0, 0)),
            ],
            scratch_shapes=[pltpu.VMEM((TDH, Wc), jnp.float32)],
        ),
        compiler_params=pltpu.CompilerParams(
            dimension_semantics=("parallel", "parallel"),
            vmem_limit_bytes=_VMEM_LIMIT),
    )(xt, wb)

    # ---- tiny cross-tile reduction -> per-sample, per-channel scale/shift ---
    cnt = float(D * H * W)
    s1 = stats[:, :, 0, :].sum(axis=1).reshape(N, W, Cout).sum(axis=1)   # (N, Cout)
    s2 = stats[:, :, 1, :].sum(axis=1).reshape(N, W, Cout).sum(axis=1)
    mean = s1 / cnt
    var = s2 / cnt - mean * mean                     # biased var == InstanceNorm3d
    inv = jax.lax.rsqrt(var + _EPS)
    scale = gamma[None, :].astype(jnp.float32) * inv
    shift = beta[None, :].astype(jnp.float32) - mean * scale
    scale_l = jnp.tile(scale, (1, W)).reshape(N, 1, Wc)   # broadcast to (w, c) lanes
    shift_l = jnp.tile(shift, (1, W)).reshape(N, 1, Wc)

    # ---- pass 2: normalize + residual + ReLU (lane-dense elementwise) -------
    out4 = pl.pallas_call(
        _norm_residual_relu_kernel,
        out_shape=jax.ShapeDtypeStruct((N, n_dt, TDH, Wc), x.dtype),
        grid_spec=pltpu.PrefetchScalarGridSpec(
            num_scalar_prefetch=0,
            grid=(N, n_dt),
            in_specs=[
                pl.BlockSpec((pl.Squeezed(), pl.Squeezed(), TDH, Wc),
                             lambda n, t: (n, t, 0, 0)),
                pl.BlockSpec((pl.Squeezed(), pl.Squeezed(), TDH, Wc),
                             lambda n, t: (n, t, 0, 0)),
                pl.BlockSpec((pl.Squeezed(), 1, Wc), lambda n, t: (n, 0, 0)),
                pl.BlockSpec((pl.Squeezed(), 1, Wc), lambda n, t: (n, 0, 0)),
            ],
            out_specs=pl.BlockSpec((pl.Squeezed(), pl.Squeezed(), TDH, Wc),
                                   lambda n, t: (n, t, 0, 0)),
        ),
        compiler_params=pltpu.CompilerParams(
            dimension_semantics=("parallel", "parallel"),
            vmem_limit_bytes=_VMEM_LIMIT),
    )(conv_out, x_res, scale_l, shift_l)

    out = out4.reshape(N, n_dt, TD, H, W, Cout).reshape(N, D, H, W, Cout)
    return jnp.transpose(out, (0, 4, 1, 2, 3))        # back to NCDHW


# --------------------------------------------------------------------------- #
# Pure-JAX reference (PyTorch Conv3d + InstanceNorm3d(affine) + residual + ReLU)
# --------------------------------------------------------------------------- #
def _reference_forward(x_ncdhw, conv_w, gamma, beta):
    out = jax.lax.conv_general_dilated(
        x_ncdhw, conv_w, window_strides=(1, 1, 1), padding=((1, 1),) * 3,
        dimension_numbers=("NCDHW", "OIDHW", "NCDHW"))
    mean = jnp.mean(out, axis=(2, 3, 4), keepdims=True)
    var = jnp.mean((out - mean) ** 2, axis=(2, 3, 4), keepdims=True)
    normed = (out - mean) * jax.lax.rsqrt(var + _EPS)
    normed = normed * gamma.reshape(1, -1, 1, 1, 1) + beta.reshape(1, -1, 1, 1, 1)
    return jnp.maximum(normed + x_ncdhw, 0.0)


if __name__ == "__main__":
    key = jax.random.PRNGKey(0)
    k_x, k_w, k_g, k_b = jax.random.split(key, 4)

    # C chosen so W*C = 128 -> fully lane-dense stores in both passes.
    N, C, D, H, W = 2, 16, 8, 8, 8            # inplanes == planes == 16
    x = jax.random.normal(k_x, (N, C, D, H, W), dtype=jnp.float32)
    conv_w = jax.random.normal(k_w, (C, C, 3, 3, 3), dtype=jnp.float32) * 0.1
    gamma = 1.0 + 0.1 * jax.random.normal(k_g, (C,), dtype=jnp.float32)
    beta = 0.1 * jax.random.normal(k_b, (C,), dtype=jnp.float32)

    # d_tile=4 -> 2 d-tiles per sample, exercising the cross-tile two-pass IN.
    fwd = jax.jit(functools.partial(resblock_forward, d_tile=4))
    out = jax.block_until_ready(fwd(x, conv_w, gamma, beta))

    ref = jax.block_until_ready(_reference_forward(x, conv_w, gamma, beta))
    np.testing.assert_allclose(np.asarray(out), np.asarray(ref),
                               rtol=1e-3, atol=1e-3)
    print("KERNEL_OK")
</pallas_src>

<mosaic_0001>
module attributes {stable_mosaic.version = 11 : i64} {
  func.func @_conv_stats_kernel(%arg0: i32, %arg1: i32, %arg2: memref<1x1x6x10x160xf32, #tpu.memory_space<vmem>>, %arg3: memref<9x160x128xf32, #tpu.memory_space<vmem>>, %arg4: memref<1x1x32x128xf32, #tpu.memory_space<vmem>>, %arg5: memref<1x1x2x128xf32, #tpu.memory_space<vmem>>, %arg6: memref<32x128xf32, #tpu.memory_space<vmem>>) attributes {dimension_semantics = [#tpu.dimension_semantics<parallel>, #tpu.dimension_semantics<parallel>], iteration_bounds = array<i64: 2, 2>, scalar_prefetch = 0 : i64, scratch_operands = 1 : i64, tpu.core_type = #tpu.core_type<tc>, window_params = [{transform_indices = @transform_0, window_bounds = array<i64: 1, 1, 6, 10, 160>}, {pipeline_mode = #tpu.pipeline_mode<synchronous>, transform_indices = @transform_1, window_bounds = array<i64: 9, 160, 128>}, {transform_indices = @transform_2, window_bounds = array<i64: 1, 1, 32, 128>}, {transform_indices = @transform_3, window_bounds = array<i64: 1, 1, 2, 128>}]} {
    %c0 = arith.constant 0 : index
    %c0_0 = arith.constant 0 : index
    %c0_1 = arith.constant 0 : index
    %c0_2 = arith.constant 0 : index
    %c0_3 = arith.constant 0 : index
    %0 = vector.load %arg2[%c0, %c0_0, %c0_1, %c0_2, %c0_3] : memref<1x1x6x10x160xf32, #tpu.memory_space<vmem>>, vector<1x1x4x8x160xf32>
    %1 = vector.shape_cast %0 : vector<1x1x4x8x160xf32> to vector<4x8x160xf32>
    %2 = vector.shape_cast %1 : vector<4x8x160xf32> to vector<32x160xf32>
    %c0_4 = arith.constant 0 : index
    %c0_5 = arith.constant 0 : index
    %c0_6 = arith.constant 0 : index
    %3 = vector.load %arg3[%c0_4, %c0_5, %c0_6] : memref<9x160x128xf32, #tpu.memory_space<vmem>>, vector<1x160x128xf32>
    %4 = vector.shape_cast %3 : vector<1x160x128xf32> to vector<160x128xf32>
    %cst = arith.constant dense<0.000000e+00> : vector<32x128xf32>
    %5 = tpu.matmul %2, %4, %cst {dimension_numbers = #tpu.dot_dimension_numbers<[1], [0], [0], [1], [0, 0, 1, 1], [], []>} : vector<32x160xf32>, vector<160x128xf32>, vector<32x128xf32> -> vector<32x128xf32>
    %c0_7 = arith.constant 0 : index
    %c0_8 = arith.constant 0 : index
    %6 = vector.load %arg6[%c0_7, %c0_8] : memref<32x128xf32, #tpu.memory_space<vmem>>, vector<32x128xf32>
    tpu.vector_store %arg6[%c0_7, %c0_8], %5 {strides = array<i32>} : memref<32x128xf32, #tpu.memory_space<vmem>>, vector<32x128xf32>,
    %c0_9 = arith.constant 0 : index
    %c0_10 = arith.constant 0 : index
    %c0_11 = arith.constant 0 : index
    %c1 = arith.constant 1 : index
    %c0_12 = arith.constant 0 : index
    %7 = vector.load %arg2[%c0_9, %c0_10, %c0_11, %c1, %c0_12] : memref<1x1x6x10x160xf32, #tpu.memory_space<vmem>>, vector<1x1x4x8x160xf32>
    %8 = vector.shape_cast %7 : vector<1x1x4x8x160xf32> to vector<4x8x160xf32>
    %9 = vector.shape_cast %8 : vector<4x8x160xf32> to vector<32x160xf32>
    %c1_13 = arith.constant 1 : index
    %c0_14 = arith.constant 0 : index
    %c0_15 = arith.constant 0 : index
    %10 = vector.load %arg3[%c1_13, %c0_14, %c0_15] : memref<9x160x128xf32, #tpu.memory_space<vmem>>, vector<1x160x128xf32>
    %11 = vector.shape_cast %10 : vector<1x160x128xf32> to vector<160x128xf32>
    %cst_16 = arith.constant dense<0.000000e+00> : vector<32x128xf32>
    %12 = tpu.matmul %9, %11, %cst_16 {dimension_numbers = #tpu.dot_dimension_numbers<[1], [0], [0], [1], [0, 0, 1, 1], [], []>} : vector<32x160xf32>, vector<160x128xf32>, vector<32x128xf32> -> vector<32x128xf32>
    %c0_17 = arith.constant 0 : index
    %c0_18 = arith.constant 0 : index
    %13 = vector.load %arg6[%c0_17, %c0_18] : memref<32x128xf32, #tpu.memory_space<vmem>>, vector<32x128xf32>
    %14 = arith.addf %13, %12 : vector<32x128xf32>
    %c0_19 = arith.constant 0 : index
    %c0_20 = arith.constant 0 : index
    %15 = vector.load %arg6[%c0_19, %c0_20] : memref<32x128xf32, #tpu.memory_space<vmem>>, vector<32x128xf32>
    tpu.vector_store %arg6[%c0_19, %c0_20], %14 {strides = array<i32>} : memref<32x128xf32, #tpu.memory_space<vmem>>, vector<32x128xf32>,
    %c0_21 = arith.constant 0 : index
    %c0_22 = arith.constant 0 : index
    %c0_23 = arith.constant 0 : index
    %c2 = arith.constant 2 : index
    %c0_24 = arith.constant 0 : index
    %16 = vector.load %arg2[%c0_21, %c0_22, %c0_23, %c2, %c0_24] : memref<1x1x6x10x160xf32, #tpu.memory_space<vmem>>, vector<1x1x4x8x160xf32>
    %17 = vector.shape_cast %16 : vector<1x1x4x8x160xf32> to vector<4x8x160xf32>
    %18 = vector.shape_cast %17 : vector<4x8x160xf32> to vector<32x160xf32>
    %c2_25 = arith.constant 2 : index
    %c0_26 = arith.constant 0 : index
    %c0_27 = arith.constant 0 : index
    %19 = vector.load %arg3[%c2_25, %c0_26, %c0_27] : memref<9x160x128xf32, #tpu.memory_space<vmem>>, vector<1x160x128xf32>
    %20 = vector.shape_cast %19 : vector<1x160x128xf32> to vector<160x128xf32>
    %cst_28 = arith.constant dense<0.000000e+00> : vector<32x128xf32>
    %21 = tpu.matmul %18, %20, %cst_28 {dimension_numbers = #tpu.dot_dimension_numbers<[1], [0], [0], [1], [0, 0, 1, 1], [], []>} : vector<32x160xf32>, vector<160x128xf32>, vector<32x128xf32> -> vector<32x128xf32>
    %c0_29 = arith.constant 0 : index
    %c0_30 = arith.constant 0 : index
    %22 = vector.load %arg6[%c0_29, %c0_30] : memref<32x128xf32, #tpu.memory_space<vmem>>, vector<32x128xf32>
    %23 = arith.addf %22, %21 : vector<32x128xf32>
    %c0_31 = arith.constant 0 : index
    %c0_32 = arith.constant 0 : index
    %24 = vector.load %arg6[%c0_31, %c0_32] : memref<32x128xf32, #tpu.memory_space<vmem>>, vector<32x128xf32>
    tpu.vector_store %arg6[%c0_31, %c0_32], %23 {strides = array<i32>} : memref<32x128xf32, #tpu.memory_space<vmem>>, vector<32x128xf32>,
    %c0_33 = arith.constant 0 : index
    %c0_34 = arith.constant 0 : index
    %c1_35 = arith.constant 1 : index
    %c0_36 = arith.constant 0 : index
    %c0_37 = arith.constant 0 : index
    %25 = vector.load %arg2[%c0_33, %c0_34, %c1_35, %c0_36, %c0_37] : memref<1x1x6x10x160xf32, #tpu.memory_space<vmem>>, vector<1x1x4x8x160xf32>
    %26 = vector.shape_cast %25 : vector<1x1x4x8x160xf32> to vector<4x8x160xf32>
    %27 = vector.shape_cast %26 : vector<4x8x160xf32> to vector<32x160xf32>
    %c3 = arith.constant 3 : index
    %c0_38 = arith.constant 0 : index
    %c0_39 = arith.constant 0 : index
    %28 = vector.load %arg3[%c3, %c0_38, %c0_39] : memref<9x160x128xf32, #tpu.memory_space<vmem>>, vector<1x160x128xf32>
    %29 = vector.shape_cast %28 : vector<1x160x128xf32> to vector<160x128xf32>
    %cst_40 = arith.constant dense<0.000000e+00> : vector<32x128xf32>
    %30 = tpu.matmul %27, %29, %cst_40 {dimension_numbers = #tpu.dot_dimension_numbers<[1], [0], [0], [1], [0, 0, 1, 1], [], []>} : vector<32x160xf32>, vector<160x128xf32>, vector<32x128xf32> -> vector<32x128xf32>
    %c0_41 = arith.constant 0 : index
    %c0_42 = arith.constant 0 : index
    %31 = vector.load %arg6[%c0_41, %c0_42] : memref<32x128xf32, #tpu.memory_space<vmem>>, vector<32x128xf32>
    %32 = arith.addf %31, %30 : vector<32x128xf32>
    %c0_43 = arith.constant 0 : index
    %c0_44 = arith.constant 0 : index
    %33 = vector.load %arg6[%c0_43, %c0_44] : memref<32x128xf32, #tpu.memory_space<vmem>>, vector<32x128xf32>
    tpu.vector_store %arg6[%c0_43, %c0_44], %32 {strides = array<i32>} : memref<32x128xf32, #tpu.memory_space<vmem>>, vector<32x128xf32>,
    %c0_45 = arith.constant 0 : index
    %c0_46 = arith.constant 0 : index
    %c1_47 = arith.constant 1 : index
    %c1_48 = arith.constant 1 : index
    %c0_49 = arith.constant 0 : index
    %34 = vector.load %arg2[%c0_45, %c0_46, %c1_47, %c1_48, %c0_49] : memref<1x1x6x10x160xf32, #tpu.memory_space<vmem>>, vector<1x1x4x8x160xf32>
    %35 = vector.shape_cast %34 : vector<1x1x4x8x160xf32> to vector<4x8x160xf32>
    %36 = vector.shape_cast %35 : vector<4x8x160xf32> to vector<32x160xf32>
    %c4 = arith.constant 4 : index
    %c0_50 = arith.constant 0 : index
    %c0_51 = arith.constant 0 : index
    %37 = vector.load %arg3[%c4, %c0_50, %c0_51] : memref<9x160x128xf32, #tpu.memory_space<vmem>>, vector<1x160x128xf32>
    %38 = vector.shape_cast %37 : vector<1x160x128xf32> to vector<160x128xf32>
    %cst_52 = arith.constant dense<0.000000e+00> : vector<32x128xf32>
    %39 = tpu.matmul %36, %38, %cst_52 {dimension_numbers = #tpu.dot_dimension_numbers<[1], [0], [0], [1], [0, 0, 1, 1], [], []>} : vector<32x160xf32>, vector<160x128xf32>, vector<32x128xf32> -> vector<32x128xf32>
    %c0_53 = arith.constant 0 : index
    %c0_54 = arith.constant 0 : index
    %40 = vector.load %arg6[%c0_53, %c0_54] : memref<32x128xf32, #tpu.memory_space<vmem>>, vector<32x128xf32>
    %41 = arith.addf %40, %39 : vector<32x128xf32>
    %c0_55 = arith.constant 0 : index
    %c0_56 = arith.constant 0 : index
    %42 = vector.load %arg6[%c0_55, %c0_56] : memref<32x128xf32, #tpu.memory_space<vmem>>, vector<32x128xf32>
    tpu.vector_store %arg6[%c0_55, %c0_56], %41 {strides = array<i32>} : memref<32x128xf32, #tpu.memory_space<vmem>>, vector<32x128xf32>,
    %c0_57 = arith.constant 0 : index
    %c0_58 = arith.constant 0 : index
    %c1_59 = arith.constant 1 : index
    %c2_60 = arith.constant 2 : index
    %c0_61 = arith.constant 0 : index
    %43 = vector.load %arg2[%c0_57, %c0_58, %c1_59, %c2_60, %c0_61] : memref<1x1x6x10x160xf32, #tpu.memory_space<vmem>>, vector<1x1x4x8x160xf32>
    %44 = vector.shape_cast %43 : vector<1x1x4x8x160xf32> to vector<4x8x160xf32>
    %45 = vector.shape_cast %44 : vector<4x8x160xf32> to vector<32x160xf32>
    %c5 = arith.constant 5 : index
    %c0_62 = arith.constant 0 : index
    %c0_63 = arith.constant 0 : index
    %46 = vector.load %arg3[%c5, %c0_62, %c0_63] : memref<9x160x128xf32, #tpu.memory_space<vmem>>, vector<1x160x128xf32>
    %47 = vector.shape_cast %46 : vector<1x160x128xf32> to vector<160x128xf32>
    %cst_64 = arith.constant dense<0.000000e+00> : vector<32x128xf32>
    %48 = tpu.matmul %45, %47, %cst_64 {dimension_numbers = #tpu.dot_dimension_numbers<[1], [0], [0], [1], [0, 0, 1, 1], [], []>} : vector<32x160xf32>, vector<160x128xf32>, vector<32x128xf32> -> vector<32x128xf32>
    %c0_65 = arith.constant 0 : index
    %c0_66 = arith.constant 0 : index
    %49 = vector.load %arg6[%c0_65, %c0_66] : memref<32x128xf32, #tpu.memory_space<vmem>>, vector<32x128xf32>
    %50 = arith.addf %49, %48 : vector<32x128xf32>
    %c0_67 = arith.constant 0 : index
    %c0_68 = arith.constant 0 : index
    %51 = vector.load %arg6[%c0_67, %c0_68] : memref<32x128xf32, #tpu.memory_space<vmem>>, vector<32x128xf32>
    tpu.vector_store %arg6[%c0_67, %c0_68], %50 {strides = array<i32>} : memref<32x128xf32, #tpu.memory_space<vmem>>, vector<32x128xf32>,
    %c0_69 = arith.constant 0 : index
    %c0_70 = arith.constant 0 : index
    %c2_71 = arith.constant 2 : index
    %c0_72 = arith.constant 0 : index
    %c0_73 = arith.constant 0 : index
    %52 = vector.load %arg2[%c0_69, %c0_70, %c2_71, %c0_72, %c0_73] : memref<1x1x6x10x160xf32, #tpu.memory_space<vmem>>, vector<1x1x4x8x160xf32>
    %53 = vector.shape_cast %52 : vector<1x1x4x8x160xf32> to vector<4x8x160xf32>
    %54 = vector.shape_cast %53 : vector<4x8x160xf32> to vector<32x160xf32>
    %c6 = arith.constant 6 : index
    %c0_74 = arith.constant 0 : index
    %c0_75 = arith.constant 0 : index
    %55 = vector.load %arg3[%c6, %c0_74, %c0_75] : memref<9x160x128xf32, #tpu.memory_space<vmem>>, vector<1x160x128xf32>
    %56 = vector.shape_cast %55 : vector<1x160x128xf32> to vector<160x128xf32>
    %cst_76 = arith.constant dense<0.000000e+00> : vector<32x128xf32>
    %57 = tpu.matmul %54, %56, %cst_76 {dimension_numbers = #tpu.dot_dimension_numbers<[1], [0], [0], [1], [0, 0, 1, 1], [], []>} : vector<32x160xf32>, vector<160x128xf32>, vector<32x128xf32> -> vector<32x128xf32>
    %c0_77 = arith.constant 0 : index
    %c0_78 = arith.constant 0 : index
    %58 = vector.load %arg6[%c0_77, %c0_78] : memref<32x128xf32, #tpu.memory_space<vmem>>, vector<32x128xf32>
    %59 = arith.addf %58, %57 : vector<32x128xf32>
    %c0_79 = arith.constant 0 : index
    %c0_80 = arith.constant 0 : index
    %60 = vector.load %arg6[%c0_79, %c0_80] : memref<32x128xf32, #tpu.memory_space<vmem>>, vector<32x128xf32>
    tpu.vector_store %arg6[%c0_79, %c0_80], %59 {strides = array<i32>} : memref<32x128xf32, #tpu.memory_space<vmem>>, vector<32x128xf32>,
    %c0_81 = arith.constant 0 : index
    %c0_82 = arith.constant 0 : index
    %c2_83 = arith.constant 2 : index
    %c1_84 = arith.constant 1 : index
    %c0_85 = arith.constant 0 : index
    %61 = vector.load %arg2[%c0_81, %c0_82, %c2_83, %c1_84, %c0_85] : memref<1x1x6x10x160xf32, #tpu.memory_space<vmem>>, vector<1x1x4x8x160xf32>
    %62 = vector.shape_cast %61 : vector<1x1x4x8x160xf32> to vector<4x8x160xf32>
    %63 = vector.shape_cast %62 : vector<4x8x160xf32> to vector<32x160xf32>
    %c7 = arith.constant 7 : index
    %c0_86 = arith.constant 0 : index
    %c0_87 = arith.constant 0 : index
    %64 = vector.load %arg3[%c7, %c0_86, %c0_87] : memref<9x160x128xf32, #tpu.memory_space<vmem>>, vector<1x160x128xf32>
    %65 = vector.shape_cast %64 : vector<1x160x128xf32> to vector<160x128xf32>
    %cst_88 = arith.constant dense<0.000000e+00> : vector<32x128xf32>
    %66 = tpu.matmul %63, %65, %cst_88 {dimension_numbers = #tpu.dot_dimension_numbers<[1], [0], [0], [1], [0, 0, 1, 1], [], []>} : vector<32x160xf32>, vector<160x128xf32>, vector<32x128xf32> -> vector<32x128xf32>
    %c0_89 = arith.constant 0 : index
    %c0_90 = arith.constant 0 : index
    %67 = vector.load %arg6[%c0_89, %c0_90] : memref<32x128xf32, #tpu.memory_space<vmem>>, vector<32x128xf32>
    %68 = arith.addf %67, %66 : vector<32x128xf32>
    %c0_91 = arith.constant 0 : index
    %c0_92 = arith.constant 0 : index
    %69 = vector.load %arg6[%c0_91, %c0_92] : memref<32x128xf32, #tpu.memory_space<vmem>>, vector<32x128xf32>
    tpu.vector_store %arg6[%c0_91, %c0_92], %68 {strides = array<i32>} : memref<32x128xf32, #tpu.memory_space<vmem>>, vector<32x128xf32>,
    %c0_93 = arith.constant 0 : index
    %c0_94 = arith.constant 0 : index
    %c2_95 = arith.constant 2 : index
    %c2_96 = arith.constant 2 : index
    %c0_97 = arith.constant 0 : index
    %70 = vector.load %arg2[%c0_93, %c0_94, %c2_95, %c2_96, %c0_97] : memref<1x1x6x10x160xf32, #tpu.memory_space<vmem>>, vector<1x1x4x8x160xf32>
    %71 = vector.shape_cast %70 : vector<1x1x4x8x160xf32> to vector<4x8x160xf32>
    %72 = vector.shape_cast %71 : vector<4x8x160xf32> to vector<32x160xf32>
    %c8 = arith.constant 8 : index
    %c0_98 = arith.constant 0 : index
    %c0_99 = arith.constant 0 : index
    %73 = vector.load %arg3[%c8, %c0_98, %c0_99] : memref<9x160x128xf32, #tpu.memory_space<vmem>>, vector<1x160x128xf32>
    %74 = vector.shape_cast %73 : vector<1x160x128xf32> to vector<160x128xf32>
    %cst_100 = arith.constant dense<0.000000e+00> : vector<32x128xf32>
    %75 = tpu.matmul %72, %74, %cst_100 {dimension_numbers = #tpu.dot_dimension_numbers<[1], [0], [0], [1], [0, 0, 1, 1], [], []>} : vector<32x160xf32>, vector<160x128xf32>, vector<32x128xf32> -> vector<32x128xf32>
    %c0_101 = arith.constant 0 : index
    %c0_102 = arith.constant 0 : index
    %76 = vector.load %arg6[%c0_101, %c0_102] : memref<32x128xf32, #tpu.memory_space<vmem>>, vector<32x128xf32>
    %77 = arith.addf %76, %75 : vector<32x128xf32>
    %c0_103 = arith.constant 0 : index
    %c0_104 = arith.constant 0 : index
    %78 = vector.load %arg6[%c0_103, %c0_104] : memref<32x128xf32, #tpu.memory_space<vmem>>, vector<32x128xf32>
    tpu.vector_store %arg6[%c0_103, %c0_104], %77 {strides = array<i32>} : memref<32x128xf32, #tpu.memory_space<vmem>>, vector<32x128xf32>,
    %c0_105 = arith.constant 0 : index
    %c0_106 = arith.constant 0 : index
    %79 = vector.load %arg6[%c0_105, %c0_106] : memref<32x128xf32, #tpu.memory_space<vmem>>, vector<32x128xf32>
    %c0_107 = arith.constant 0 : index
    %c0_108 = arith.constant 0 : index
    %c0_109 = arith.constant 0 : index
    %c0_110 = arith.constant 0 : index
    %80 = vector.load %arg4[%c0_107, %c0_108, %c0_109, %c0_110] : memref<1x1x32x128xf32, #tpu.memory_space<vmem>>, vector<1x1x32x128xf32>
    %81 = vector.shape_cast %80 : vector<1x1x32x128xf32> to vector<32x128xf32>
    %82 = vector.shape_cast %79 : vector<32x128xf32> to vector<1x1x32x128xf32>
    tpu.vector_store %arg4[%c0_107, %c0_108, %c0_109, %c0_110], %82 {strides = array<i32>} : memref<1x1x32x128xf32, #tpu.memory_space<vmem>>, vector<1x1x32x128xf32>,
    %cst_111 = arith.constant dense<0.000000e+00> : vector<128xf32>
    %83 = vector.multi_reduction <add>, %79, %cst_111 [0] : vector<32x128xf32> to vector<128xf32>
    %84 = vector.shape_cast %83 : vector<128xf32> to vector<1x128xf32>
    %85 = arith.mulf %79, %79 : vector<32x128xf32>
    %cst_112 = arith.constant dense<0.000000e+00> : vector<128xf32>
    %86 = vector.multi_reduction <add>, %85, %cst_112 [0] : vector<32x128xf32> to vector<128xf32>
    %87 = vector.shape_cast %86 : vector<128xf32> to vector<1x128xf32>
    %88 = tpu.concatenate %84, %87 in 0 : vector<1x128xf32>, vector<1x128xf32> -> vector<2x128xf32>
    %c0_113 = arith.constant 0 : index
    %c0_114 = arith.constant 0 : index
    %c0_115 = arith.constant 0 : index
    %c0_116 = arith.constant 0 : index
    %89 = vector.load %arg5[%c0_113, %c0_114, %c0_115, %c0_116] : memref<1x1x2x128xf32, #tpu.memory_space<vmem>>, vector<1x1x2x128xf32>
    %90 = vector.shape_cast %89 : vector<1x1x2x128xf32> to vector<2x128xf32>
    %91 = vector.shape_cast %88 : vector<2x128xf32> to vector<1x1x2x128xf32>
    tpu.vector_store %arg5[%c0_113, %c0_114, %c0_115, %c0_116], %91 {strides = array<i32>} : memref<1x1x2x128xf32, #tpu.memory_space<vmem>>, vector<1x1x2x128xf32>,
    return
  }
  func.func @transform_0(%arg0: i32, %arg1: i32) -> (i32, i32, i32, i32, i32) {
    %c0_i32 = arith.constant 0 : i32
    %c0_i32_0 = arith.constant 0 : i32
    %c0_i32_1 = arith.constant 0 : i32
    %c0_i32_2 = arith.constant 0 : i32
    return %arg0, %arg1, %c0_i32, %c0_i32_0, %c0_i32_1 : i32, i32, i32, i32, i32
  }
  func.func @transform_1(%arg0: i32, %arg1: i32) -> (i32, i32, i32) {
    %c0_i32 = arith.constant 0 : i32
    %c0_i32_0 = arith.constant 0 : i32
    %c0_i32_1 = arith.constant 0 : i32
    %c0_i32_2 = arith.constant 0 : i32
    return %c0_i32, %c0_i32_0, %c0_i32_1 : i32, i32, i32
  }
  func.func @transform_2(%arg0: i32, %arg1: i32) -> (i32, i32, i32, i32) {
    %c0_i32 = arith.constant 0 : i32
    %c0_i32_0 = arith.constant 0 : i32
    %c0_i32_1 = arith.constant 0 : i32
    return %arg0, %arg1, %c0_i32, %c0_i32_0 : i32, i32, i32, i32
  }
  func.func @transform_3(%arg0: i32, %arg1: i32) -> (i32, i32, i32, i32) {
    %c0_i32 = arith.constant 0 : i32
    %c0_i32_0 = arith.constant 0 : i32
    %c0_i32_1 = arith.constant 0 : i32
    return %arg0, %arg1, %c0_i32, %c0_i32_0 : i32, i32, i32, i32
  }
}

module attributes {stable_mosaic.version = 11 : i64} {
  func.func @_norm_residual_relu_kernel(%arg0: i32, %arg1: i32, %arg2: memref<1x1x32x128xf32, #tpu.memory_space<vmem>>, %arg3: memref<1x1x32x128xf32, #tpu.memory_space<vmem>>, %arg4: memref<1x1x128xf32, #tpu.memory_space<vmem>>, %arg5: memref<1x1x128xf32, #tpu.memory_space<vmem>>, %arg6: memref<1x1x32x128xf32, #tpu.memory_space<vmem>>) attributes {dimension_semantics = [#tpu.dimension_semantics<parallel>, #tpu.dimension_semantics<parallel>], iteration_bounds = array<i64: 2, 2>, scalar_prefetch = 0 : i64, scratch_operands = 0 : i64, tpu.core_type = #tpu.core_type<tc>, window_params = [{transform_indices = @transform_0, window_bounds = array<i64: 1, 1, 32, 128>}, {transform_indices = @transform_1, window_bounds = array<i64: 1, 1, 32, 128>}, {transform_indices = @transform_2, window_bounds = array<i64: 1, 1, 128>}, {transform_indices = @transform_3, window_bounds = array<i64: 1, 1, 128>}, {transform_indices = @transform_4, window_bounds = array<i64: 1, 1, 32, 128>}]} {
    %c0 = arith.constant 0 : index
    %c0_0 = arith.constant 0 : index
    %c0_1 = arith.constant 0 : index
    %c0_2 = arith.constant 0 : index
    %0 = vector.load %arg2[%c0, %c0_0, %c0_1, %c0_2] : memref<1x1x32x128xf32, #tpu.memory_space<vmem>>, vector<1x1x32x128xf32>
    %1 = vector.shape_cast %0 : vector<1x1x32x128xf32> to vector<32x128xf32>
    %c0_3 = arith.constant 0 : index
    %c0_4 = arith.constant 0 : index
    %c0_5 = arith.constant 0 : index
    %2 = vector.load %arg4[%c0_3, %c0_4, %c0_5] : memref<1x1x128xf32, #tpu.memory_space<vmem>>, vector<1x1x128xf32>
    %3 = vector.shape_cast %2 : vector<1x1x128xf32> to vector<1x128xf32>
    %4 = vector.broadcast %3 : vector<1x128xf32> to vector<32x128xf32>
    %5 = arith.mulf %1, %4 : vector<32x128xf32>
    %c0_6 = arith.constant 0 : index
    %c0_7 = arith.constant 0 : index
    %c0_8 = arith.constant 0 : index
    %6 = vector.load %arg5[%c0_6, %c0_7, %c0_8] : memref<1x1x128xf32, #tpu.memory_space<vmem>>, vector<1x1x128xf32>
    %7 = vector.shape_cast %6 : vector<1x1x128xf32> to vector<1x128xf32>
    %8 = vector.broadcast %7 : vector<1x128xf32> to vector<32x128xf32>
    %9 = arith.addf %5, %8 : vector<32x128xf32>
    %c0_9 = arith.constant 0 : index
    %c0_10 = arith.constant 0 : index
    %c0_11 = arith.constant 0 : index
    %c0_12 = arith.constant 0 : index
    %10 = vector.load %arg3[%c0_9, %c0_10, %c0_11, %c0_12] : memref<1x1x32x128xf32, #tpu.memory_space<vmem>>, vector<1x1x32x128xf32>
    %11 = vector.shape_cast %10 : vector<1x1x32x128xf32> to vector<32x128xf32>
    %12 = arith.addf %9, %11 : vector<32x128xf32>
    %cst = arith.constant 0.000000e+00 : f32
    %13 = vector.broadcast %cst : f32 to vector<32x128xf32>
    %14 = arith.maximumf %12, %13 : vector<32x128xf32>
    %c0_13 = arith.constant 0 : index
    %c0_14 = arith.constant 0 : index
    %c0_15 = arith.constant 0 : index
    %c0_16 = arith.constant 0 : index
    %15 = vector.load %arg6[%c0_13, %c0_14, %c0_15, %c0_16] : memref<1x1x32x128xf32, #tpu.memory_space<vmem>>, vector<1x1x32x128xf32>
    %16 = vector.shape_cast %15 : vector<1x1x32x128xf32> to vector<32x128xf32>
    %17 = vector.shape_cast %14 : vector<32x128xf32> to vector<1x1x32x128xf32>
    tpu.vector_store %arg6[%c0_13, %c0_14, %c0_15, %c0_16], %17 {strides = array<i32>} : memref<1x1x32x128xf32, #tpu.memory_space<vmem>>, vector<1x1x32x128xf32>,
    return
  }
  func.func @transform_0(%arg0: i32, %arg1: i32) -> (i32, i32, i32, i32) {
    %c0_i32 = arith.constant 0 : i32
    %c0_i32_0 = arith.constant 0 : i32
    %c0_i32_1 = arith.constant 0 : i32
    return %arg0, %arg1, %c0_i32, %c0_i32_0 : i32, i32, i32, i32
  }
  func.func @transform_1(%arg0: i32, %arg1: i32) -> (i32, i32, i32, i32) {
    %c0_i32 = arith.constant 0 : i32
    %c0_i32_0 = arith.constant 0 : i32
    %c0_i32_1 = arith.constant 0 : i32
    return %arg0, %arg1, %c0_i32, %c0_i32_0 : i32, i32, i32, i32
  }
  func.func @transform_2(%arg0: i32, %arg1: i32) -> (i32, i32, i32) {
    %c0_i32 = arith.constant 0 : i32
    %c0_i32_0 = arith.constant 0 : i32
    %c0_i32_1 = arith.constant 0 : i32
    return %arg0, %c0_i32, %c0_i32_0 : i32, i32, i32
  }
  func.func @transform_3(%arg0: i32, %arg1: i32) -> (i32, i32, i32) {
    %c0_i32 = arith.constant 0 : i32
    %c0_i32_0 = arith.constant 0 : i32
    %c0_i32_1 = arith.constant 0 : i32
    return %arg0, %c0_i32, %c0_i32_0 : i32, i32, i32
  }
  func.func @transform_4(%arg0: i32, %arg1: i32) -> (i32, i32, i32, i32) {
    %c0_i32 = arith.constant 0 : i32
    %c0_i32_0 = arith.constant 0 : i32
    %c0_i32_1 = arith.constant 0 : i32
    return %arg0, %arg1, %c0_i32, %c0_i32_0 : i32, i32, i32, i32
  }
}

</mosaic_0001>

<llo_original>
// kernel: resblock_forward.2
$region0: #{resblock_forward.2}
  #allocation0 [shape = 'u32[]', space=smem, size = 0x4, offset = 0x4, fixed_abs, tag = 'smem constant byte address 0x4 - core index']
  #allocation1 [shape = 'u32[144,128]{1,0:T(1,128)}', space=vmem, size = 0x12000, scoped, tag = 'internal scratch']
  #allocation2 [shape = 'f32[32,128]{1,0:T(8,128)}', space=vmem, size = 0x4000, scoped, tag = 'scratch operand']
  %s0 = inlined_call_operand.vmem [shape: f32[2,2,6,10,160], index: 0, kind: input, shape index: {}]
  %s1 = inlined_call_operand.vmem [shape: f32[9,160,128], index: 1, kind: input, shape index: {}]
  %s2 = inlined_call_operand.vmem [shape: f32[2,2,32,128], index: 2, kind: output, shape index: {0}]
  %s3 = inlined_call_operand.vmem [shape: f32[2,2,2,128], index: 3, kind: output, shape index: {1}]
  %4 = xla_tuple %s2, %s3
  %s5 = sld [smem:[#allocation0]]
  $region49: #{resblock_forward.2} parent=0
    _
  %s7 = ssub.s32 1, %s5
  %s8 = scalar_select 0, %s7, %s5
  loop: start=0, step=1, limit=6
  $region2: #{resblock_forward.2} parent=0 // loop_pre_header
    _
  $region3: #{resblock_forward.2} parent=0 // loop_header
    %s10 = sphi 0, %s14
    %p11 = scmp.ge.s32.totalorder %s10, 6
    %s17 = sphi 0, %s29
    %s18 = sphi 0, %s25
    %s19 = sphi 0, %s17
    %s20 = sphi 0, %s18
    %s21 = sphi 0, %s19
    %s22 = sphi 0, %s20
    %s34 = sphi 0, %s36
    %s37 = sphi 0, %s34
    %s38 = sphi 0, %s37
    %s54 = sphi 0, %s38
    %s58 = sphi 0, %s58
    %s60 = sphi 0, %s58
    %s61 = sphi 0, %s60
    %s75 = sphi 0, %s61
    %s83 = sphi 0, %s85
    %s86 = sphi 0, %s83
    %s87 = sphi 0, %s86
    %s103 = sphi 0, %s87
    %s111 = sphi 0, %s113
    %s114 = sphi 0, %s111
    %s115 = sphi 0, %s114
    %s131 = sphi 0, %s115
  $region4: #{resblock_forward.2} parent=0 // loop_header_branch
    %13 = sbr.rel (%p11) target = $region8
  $region5: #{resblock_forward.2} parent=0 // loop_body
    %s15 = ssub.s32 %s10, 1
    %s16 = ssub.s32 %s10, 2
    %s23 = sadd.s32 1, %s18
    %p24 = scmp.ge.s32.totalorder %s23, 2
    %s25 = scalar_select %p24, 0, %s23
    %s26 = sadd.s32 1, %s17
    %s27 = scalar_select %p24, %s26, %s17
    %p28 = scmp.ge.s32.totalorder %s27, 2
    %s29 = scalar_select %p28, 0, %s27
    %s30 = ssub.s32 %s17, %s29
    %s31 = ssub.s32 %s18, %s25
    %s32 = sor.u32 %s30, %s31
    %p33 = scmp.eq.s32.totalorder %s32, 0
    %s35 = sadd.s32 %s34, 1
    %s36 = scalar_select %p33, %s34, %s35
    %p39 = pneg %p33
    %p40 = scmp.eq.s32.totalorder %s10, 3
    %p41 = por %p39, %p40
    %p42 = scmp.ne.s32.totalorder %s34, %s37
    %p43 = scmp.eq.s32.totalorder %s10, 0
    %p44 = por %p42, %p43
    %p45 = scmp.ne.s32.totalorder %s34, %s37
    %p46 = scmp.eq.s32.totalorder %s15, 3
    %p47 = por %p45, %p46
    %p48 = scmp.ne.s32.totalorder %s37, %s38
    %p49 = scmp.eq.s32.totalorder %s15, 0
    %p50 = por %p48, %p49
    %p51 = scmp.ne.s32.totalorder %s37, %s38
    %p52 = scmp.eq.s32.totalorder %s16, 3
    %p53 = por %p51, %p52
    %p55 = scmp.ne.s32.totalorder %s38, %s54
    %p56 = scmp.eq.s32.totalorder %s16, 0
    %p57 = por %p55, %p56
    %s59 = sadd.s32 %s58, 1
    %p62 = scmp.eq.s32.totalorder %s10, 3
    %p63 = scmp.ne.s32.totalorder %s58, %s60
    %p64 = scmp.eq.s32.totalorder %s10, 0
    %p65 = por %p63, %p64
    %p66 = scmp.ne.s32.totalorder %s58, %s60
    %p67 = scmp.eq.s32.totalorder %s15, 3
    %p68 = por %p66, %p67
    %p69 = scmp.ne.s32.totalorder %s60, %s61
    %p70 = scmp.eq.s32.totalorder %s15, 0
    %p71 = por %p69, %p70
    %p72 = scmp.ne.s32.totalorder %s60, %s61
    %p73 = scmp.eq.s32.totalorder %s16, 3
    %p74 = por %p72, %p73
    %p76 = scmp.ne.s32.totalorder %s61, %s75
    %p77 = scmp.eq.s32.totalorder %s16, 0
    %p78 = por %p76, %p77
    %s79 = ssub.s32 %s17, %s29
    %s80 = ssub.s32 %s18, %s25
    %s81 = sor.u32 %s79, %s80
    %p82 = scmp.eq.s32.totalorder %s81, 0
    %s84 = sadd.s32 %s83, 1
    %s85 = scalar_select %p82, %s83, %s84
    %p88 = pneg %p82
    %p89 = scmp.eq.s32.totalorder %s10, 3
    %p90 = por %p88, %p89
    %p91 = scmp.ne.s32.totalorder %s83, %s86
    %p92 = scmp.eq.s32.totalorder %s10, 0
    %p93 = por %p91, %p92
    %p94 = scmp.ne.s32.totalorder %s83, %s86
    %p95 = scmp.eq.s32.totalorder %s15, 3
    %p96 = por %p94, %p95
    %p97 = scmp.ne.s32.totalorder %s86, %s87
    %p98 = scmp.eq.s32.totalorder %s15, 0
    %p99 = por %p97, %p98
    %p100 = scmp.ne.s32.totalorder %s86, %s87
    %p101 = scmp.eq.s32.totalorder %s16, 3
    %p102 = por %p100, %p101
    %p104 = scmp.ne.s32.totalorder %s87, %s103
    %p105 = scmp.eq.s32.totalorder %s16, 0
    %p106 = por %p104, %p105
    %s107 = ssub.s32 %s17, %s29
    %s108 = ssub.s32 %s18, %s25
    %s109 = sor.u32 %s107, %s108
    %p110 = scmp.eq.s32.totalorder %s109, 0
    %s112 = sadd.s32 %s111, 1
    %s113 = scalar_select %p110, %s111, %s112
    %p116 = pneg %p110
    %p117 = scmp.eq.s32.totalorder %s10, 3
    %p118 = por %p116, %p117
    %p119 = scmp.ne.s32.totalorder %s111, %s114
    %p120 = scmp.eq.s32.totalorder %s10, 0
    %p121 = por %p119, %p120
    %p122 = scmp.ne.s32.totalorder %s111, %s114
    %p123 = scmp.eq.s32.totalorder %s15, 3
    %p124 = por %p122, %p123
    %p125 = scmp.ne.s32.totalorder %s114, %s115
    %p126 = scmp.eq.s32.totalorder %s15, 0
    %p127 = por %p125, %p126
    %p128 = scmp.ne.s32.totalorder %s114, %s115
    %p129 = scmp.eq.s32.totalorder %s16, 3
    %p130 = por %p128, %p129
    %p132 = scmp.ne.s32.totalorder %s115, %s131
    %p133 = scmp.eq.s32.totalorder %s16, 0
    %p134 = por %p132, %p133
    %p135 = scmp.le.s32.totalorder 1, %s10
    %p136 = scmp.lt.s32.totalorder %s10, 5
    %p137 = pnand %p135, %p136
    %p138 = pneg %p137
    // Predicated region
    $region9: #{resblock_forward.2} parent=5 // pred_check
      _
    $region10: #{resblock_forward.2} parent=5 // pred_check_branch
      %140 = sbr.rel (%p137) target = $region12
    $region11: #{resblock_forward.2} parent=5 // pred_region
      %s141 = ssub.s32 %s10, 1
      // Predicated region
      $region13: #{resblock_forward.2} parent=11 // pred_check
        %p142 = pneg %p71
      $region14: #{resblock_forward.2} parent=11 // pred_check_branch
        %144 = sbr.rel (%p142) target = $region16
      $region15: #{resblock_forward.2} parent=11 // pred_region
        _
      $region16: #{resblock_forward.2} parent=11 // pred_fallthru
        _
    $region12: #{resblock_forward.2} parent=5 // pred_fallthru
      _
    %p145 = scmp.lt.s32.totalorder %s10, 4
    // Predicated region
    $region17: #{resblock_forward.2} parent=5 // pred_check
      %p146 = pneg %p145
    $region18: #{resblock_forward.2} parent=5 // pred_check_branch
      %148 = sbr.rel (%p146) target = $region20
    $region19: #{resblock_forward.2} parent=5 // pred_region
      // Predicated region
      $region21: #{resblock_forward.2} parent=19 // pred_check
        %p149 = pneg %p44
      $region22: #{resblock_forward.2} parent=19 // pred_check_branch
        %151 = sbr.rel (%p149) target = $region24
      $region23: #{resblock_forward.2} parent=19 // pred_region
        %p152 = scmp.lt.s32.totalorder %s17, 1
        %s153 = scalar_select %p152, %s17, 1
        %p154 = scmp.lt.s32.totalorder %s18, 1
        %s155 = scalar_select %p154, %s18, 1
        %s156 = smul.addr %s155, 24
        %s157 = smul.addr %s153, 48
        %s158 = sadd.s32 %s156, %s157
        %s159 = smul.addr %s158, 8
        %s160 = scalar_lea.vmem %s0, %s159
      $region24: #{resblock_forward.2} parent=19 // pred_fallthru
        _
    $region20: #{resblock_forward.2} parent=5 // pred_fallthru
      _
    %p161 = scmp.le.s32.totalorder 1, %s10
    %p162 = scmp.lt.s32.totalorder %s10, 5
    %p163 = pnand %p161, %p162
    %p164 = pneg %p163
    // Predicated region
    $region25: #{resblock_forward.2} parent=5 // pred_check
      _
    $region26: #{resblock_forward.2} parent=5 // pred_check_branch
      %166 = sbr.rel (%p163) target = $region28
    $region27: #{resblock_forward.2} parent=5 // pred_region
      %s167 = ssub.s32 %s10, 1
      %p168 = scmp.lt.s32.totalorder %s19, 1
      %s169 = scalar_select %p168, %s19, 1
      %p170 = scmp.lt.s32.totalorder %s20, 1
      %s171 = scalar_select %p170, %s20, 1
      %s172 = smul.addr %s171, 24
      %s173 = smul.addr %s169, 48
      %s174 = sadd.s32 %s172, %s173
      %s175 = smul.addr %s174, 8
      %s176 = scalar_lea.vmem %s0, %s175
      %p177 = pneg %p50
      %p178 = pneg %p47
      %p179 = pneg %p71
      %p180 = pneg %p68
      %p181 = pneg %p99
      %p182 = pneg %p96
      %p183 = scmp.lt.s32.totalorder %s19, 1
      %s184 = scalar_select %p183, %s19, 1
      %p185 = scmp.lt.s32.totalorder %s20, 1
      %s186 = scalar_select %p185, %s20, 1
      %s187 = smul.addr %s186, 4
      %s188 = smul.addr %s184, 8
      %s189 = sadd.s32 %s187, %s188
      %s190 = smul.addr %s189, 8
      %s191 = scalar_lea.vmem %s2, %s190
      %p192 = pneg %p127
      %p193 = pneg %p124
      %p194 = scmp.lt.s32.totalorder %s19, 1
      %s195 = scalar_select %p194, %s19, 1
      %p196 = scmp.lt.s32.totalorder %s20, 1
      %s197 = scalar_select %p196, %s20, 1
      %s198 = smul.addr %s195, 2
      %s199 = sadd.s32 %s197, %s198
      %s200 = smul.addr %s199, 2
      %s201 = scalar_lea.vmem %s3, %s200
      %p202 = scmp.lt.s32.totalorder %s19, 1
      %s203 = scalar_select %p202, %s19, 1
      %p204 = scmp.lt.s32.totalorder %s20, 1
      %s205 = scalar_select %p204, %s20, 1
      %s206 = smul.addr %s205, 24
      %s207 = smul.addr %s203, 48
      %s208 = sadd.s32 %s206, %s207
      %s209 = smul.addr %s208, 8
      %s210 = scalar_lea.vmem %s0, %s209
      %p211 = scmp.lt.s32.totalorder %s19, 1
      %s212 = scalar_select %p211, %s19, 1
      %p213 = scmp.lt.s32.totalorder %s20, 1
      %s214 = scalar_select %p213, %s20, 1
      %s215 = smul.addr %s214, 4
      %s216 = smul.addr %s212, 8
      %s217 = sadd.s32 %s215, %s216
      %s218 = smul.addr %s217, 8
      %s219 = scalar_lea.vmem %s2, %s218
      %p220 = scmp.lt.s32.totalorder %s19, 1
      %s221 = scalar_select %p220, %s19, 1
      %p222 = scmp.lt.s32.totalorder %s20, 1
      %s223 = scalar_select %p222, %s20, 1
      %s224 = smul.addr %s221, 2
      %s225 = sadd.s32 %s223, %s224
      %s226 = smul.addr %s225, 2
      %s227 = scalar_lea.vmem %s3, %s226
      %v228 = vld [vmem:[%s210] sm:$0xff]
      %v229 = vld [vmem:[%s210 + $0x8] sm:$0xff]
      %v230 = vld [vmem:[%s210 + $0x20] sm:$0xff]
      %v231 = vld [vmem:[%s210 + $0x28] sm:$0xff]
      %v232 = vld [vmem:[%s210 + $0x40] sm:$0xff]
      %v233 = vld [vmem:[%s210 + $0x48] sm:$0xff]
      %v234 = vld [vmem:[%s210 + $0x60] sm:$0xff]
      %v235 = vld [vmem:[%s210 + $0x68] sm:$0xff]
      %v236 = vld [vmem:[%s1] sm:$0xff]
      %v237 = vld [vmem:[%s1 + $0x8] sm:$0xff]
      %v238 = vld [vmem:[%s1 + $0x10] sm:$0xff]
      %v239 = vld [vmem:[%s1 + $0x18] sm:$0xff]
      %v240 = vld [vmem:[%s1 + $0x20] sm:$0xff]
      %v241 = vld [vmem:[%s1 + $0x28] sm:$0xff]
      %v242 = vld [vmem:[%s1 + $0x30] sm:$0xff]
      %v243 = vld [vmem:[%s1 + $0x38] sm:$0xff]
      %v244 = vld [vmem:[%s1 + $0x40] sm:$0xff]
      %v245 = vld [vmem:[%s1 + $0x48] sm:$0xff]
      %v246 = vld [vmem:[%s1 + $0x50] sm:$0xff]
      %v247 = vld [vmem:[%s1 + $0x58] sm:$0xff]
      %v248 = vld [vmem:[%s1 + $0x60] sm:$0xff]
      %v249 = vld [vmem:[%s1 + $0x68] sm:$0xff]
      %v250 = vld [vmem:[%s1 + $0x70] sm:$0xff]
      %v251 = vld [vmem:[%s1 + $0x78] sm:$0xff]
      %v252 = vld [vmem:[%s1 + $0x80] sm:$0xff]
      %v253 = vld [vmem:[%s1 + $0x88] sm:$0xff]
      %v254 = vld [vmem:[%s1 + $0x90] sm:$0xff]
      %v255 = vld [vmem:[%s1 + $0x98] sm:$0xff]
      %vm256 = vcmask 261120
      %v258 = vsel %vm256, %v229, 0
      %v261 = vsel %vm256, %v231, 0
      %v264 = vsel %vm256, %v233, 0
      %v267 = vsel %vm256, %v235, 0
      %269 = vmatprep.subr.mxu0 0.0
      %270 = vmatpush1.msra.mxu0 %v251
      %271 = vmatprep.subr.mxu0 0.0
      %272 = vmatpush1.msra.mxu0 %v250
      %273 = vmatprep.subr.mxu0 0.0
      %274 = vmatpush1.msra.mxu0 %v249
      %275 = vmatprep.subr.mxu0 0.0
      %276 = vmatpush1.msra.mxu0 %v248
      %277 = vmatprep.subr.mxu0 0.0
      %278 = vmatpush1.msra.mxu0 %v247
      %279 = vmatprep.subr.mxu0 0.0
      %280 = vmatpush1.msra.mxu0 %v246
      %281 = vmatprep.subr.mxu0 0.0
      %282 = vmatpush1.msra.mxu0 %v245
      %283 = vmatprep.subr.mxu0 0.0
      %284 = vmatpush1.msra.mxu0 %v244
      %285 = vmatprep.subr.mxu0 0.0
      %286 = vmatpush1.msra.mxu0 %v243
      %287 = vmatprep.subr.mxu0 0.0
      %288 = vmatpush1.msra.mxu0 %v242
      %289 = vmatprep.subr.mxu0 0.0
      %290 = vmatpush1.msra.mxu0 %v241
      %291 = vmatprep.subr.mxu0 0.0
      %292 = vmatpush1.msra.mxu0 %v240
      %293 = vmatprep.subr.mxu0 0.0
      %294 = vmatpush1.msra.mxu0 %v239
      %295 = vmatprep.subr.mxu0 0.0
      %296 = vmatpush1.msra.mxu0 %v238
      %297 = vmatprep.subr.mxu0 0.0
      %298 = vmatpush1.msra.mxu0 %v237
      %299 = vmatprep.subr.mxu0 0.0
      %300 = vmatpush1.msra.mxu0 %v236
      %301 = vmatprep.subr.mxu0 0.0
      %302 = vmatpush2.msra.mxu0 0.0
      %303 = vmatprep.subr.mxu0 0.0
      %304 = vmatpush2.msra.mxu0 0.0
      %305 = vmatprep.subr.mxu0 0.0
      %306 = vmatpush2.msra.mxu0 0.0
      %307 = vmatprep.subr.mxu0 0.0
      %308 = vmatpush2.msra.mxu0 0.0
      %309 = vmatprep.subr.mxu0 0.0
      %310 = vmatpush2.msra.mxu0 0.0
      %311 = vmatprep.subr.mxu0 0.0
      %312 = vmatpush2.msra.mxu0 0.0
      %313 = vmatprep.subr.mxu0 0.0
      %314 = vmatpush2.msra.mxu0 0.0
      %315 = vmatprep.subr.mxu0 0.0
      %316 = vmatpush2.msra.mxu0 0.0
      %317 = vmatprep.subr.mxu0 0.0
      %318 = vmatpush2.msra.mxu0 0.0
      %319 = vmatprep.subr.mxu0 0.0
      %320 = vmatpush2.msra.mxu0 0.0
      %321 = vmatprep.subr.mxu0 0.0
      %322 = vmatpush2.msra.mxu0 0.0
      %323 = vmatprep.subr.mxu0 0.0
      %324 = vmatpush2.msra.mxu0 0.0
      %325 = vmatprep.subr.mxu0 0.0
      %326 = vmatpush2.msra.mxu0 %v255
      %327 = vmatprep.subr.mxu0 0.0
      %328 = vmatpush2.msra.mxu0 %v254
      %329 = vmatprep.subr.mxu0 0.0
      %330 = vmatpush2.msra.mxu0 %v253
      %331 = vmatprep.subr.mxu0 0.0
      %332 = vmatpush2.msra.mxu0 %v252
      %333 = vmatprep.mubr.f32.mxu0 %v258
      %334 = vmatmul.mubr.f32.gmra.mxu0 %v228
      %v335 = vpop.f32.mrf.mxu0
      %v336 = vadd.f32 0.0, %v335
      %v337 = vpop.f32.mrf.mxu0
      %338 = vmatprep.mubr.f32.mxu0 %v261
      %339 = vmatmul.mubr.f32.gmra.mxu0 %v230
      %v340 = vpop.f32.mrf.mxu0
      %v341 = vadd.f32 0.0, %v340
      %v342 = vpop.f32.mrf.mxu0
      %343 = vmatprep.mubr.f32.mxu0 %v264
      %344 = vmatmul.mubr.f32.gmra.mxu0 %v232
      %v345 = vpop.f32.mrf.mxu0
      %v346 = vadd.f32 0.0, %v345
      %v347 = vpop.f32.mrf.mxu0
      %348 = vmatprep.mubr.f32.mxu0 %v267
      %349 = vmatmul.mubr.f32.gmra.mxu0 %v234
      %v350 = vpop.f32.mrf.mxu0
      %v351 = vadd.f32 0.0, %v350
      %v352 = vpop.f32.mrf.mxu0
      %353 = vdwg.mxu0
      %354 = vst [vmem:[#allocation2] sm:$0xff] %v336
      %355 = vst [vmem:[#allocation2 + $0x8] sm:$0xff] %v341
      %356 = vst [vmem:[#allocation2 + $0x10] sm:$0xff] %v346
      %357 = vst [vmem:[#allocation2 + $0x18] sm:$0xff] %v351
      %v358 = vld [vmem:[%s210] sm:$0xfe]
      %v359 = vld [vmem:[%s210 + $0x8] sm:$0xfe]
      %v360 = vld [vmem:[%s210 + $0x10] sm:$0x1]
      %v361 = vld [vmem:[%s210 + $0x18] sm:$0x1]
      %v362 = vld [vmem:[%s210 + $0x20] sm:$0xfe]
      %v363 = vld [vmem:[%s210 + $0x28] sm:$0xfe]
      %v364 = vld [vmem:[%s210 + $0x30] sm:$0x1]
      %v365 = vld [vmem:[%s210 + $0x38] sm:$0x1]
      %v366 = vld [vmem:[%s210 + $0x40] sm:$0xfe]
      %v367 = vld [vmem:[%s210 + $0x48] sm:$0xfe]
      %v368 = vld [vmem:[%s210 + $0x50] sm:$0x1]
      %v369 = vld [vmem:[%s210 + $0x58] sm:$0x1]
      %v370 = vld [vmem:[%s210 + $0x60] sm:$0xfe]
      %v371 = vld [vmem:[%s210 + $0x68] sm:$0xfe]
      %v372 = vld [vmem:[%s210 + $0x70] sm:$0x1]
      %v373 = vld [vmem:[%s210 + $0x78] sm:$0x1]
      %vm390 = vcmask 1046528
      %v391 = vrot.slane %v358, 1
      %v392 = vrot.slane %v360, 1
      %v393 = vsel %vm390, %v391, %v392
      %v394 = vrot.slane %v359, 1
      %v395 = vrot.slane %v361, 1
      %v396 = vsel %vm390, %v394, %v395
      %v397 = vrot.slane %v362, 1
      %v398 = vrot.slane %v364, 1
      %v399 = vsel %vm390, %v397, %v398
      %v400 = vrot.slane %v363, 1
      %v401 = vrot.slane %v365, 1
      %v402 = vsel %vm390, %v400, %v401
      %v403 = vrot.slane %v366, 1
      %v404 = vrot.slane %v368, 1
      %v405 = vsel %vm390, %v403, %v404
      %v406 = vrot.slane %v367, 1
      %v407 = vrot.slane %v369, 1
      %v408 = vsel %vm390, %v406, %v407
      %v409 = vrot.slane %v370, 1
      %v410 = vrot.slane %v372, 1
      %v411 = vsel %vm390, %v409, %v410
      %v412 = vrot.slane %v371, 1
      %v413 = vrot.slane %v373, 1
      %v414 = vsel %vm390, %v412, %v413
      %s419 = scalar_lea.vmem %s1, 160
      %v420 = vld [vmem:[%s419] sm:$0xff]
      %v421 = vld [vmem:[%s419 + $0x8] sm:$0xff]
      %v422 = vld [vmem:[%s419 + $0x10] sm:$0xff]
      %v423 = vld [vmem:[%s419 + $0x18] sm:$0xff]
      %v424 = vld [vmem:[%s419 + $0x20] sm:$0xff]
      %v425 = vld [vmem:[%s419 + $0x28] sm:$0xff]
      %v426 = vld [vmem:[%s419 + $0x30] sm:$0xff]
      %v427 = vld [vmem:[%s419 + $0x38] sm:$0xff]
      %v428 = vld [vmem:[%s419 + $0x40] sm:$0xff]
      %v429 = vld [vmem:[%s419 + $0x48] sm:$0xff]
      %v430 = vld [vmem:[%s419 + $0x50] sm:$0xff]
      %v431 = vld [vmem:[%s419 + $0x58] sm:$0xff]
      %v432 = vld [vmem:[%s419 + $0x60] sm:$0xff]
      %v433 = vld [vmem:[%s419 + $0x68] sm:$0xff]
      %v434 = vld [vmem:[%s419 + $0x70] sm:$0xff]
      %v435 = vld [vmem:[%s419 + $0x78] sm:$0xff]
      %v436 = vld [vmem:[%s419 + $0x80] sm:$0xff]
      %v437 = vld [vmem:[%s419 + $0x88] sm:$0xff]
      %v438 = vld [vmem:[%s419 + $0x90] sm:$0xff]
      %v439 = vld [vmem:[%s419 + $0x98] sm:$0xff]
      %v440 = vsel %vm256, %v396, 0
      %v442 = vsel %vm256, %v402, 0
      %v444 = vsel %vm256, %v408, 0
      %v446 = vsel %vm256, %v414, 0
      %448 = vmatprep.subr.mxu0 0.0
      %449 = vmatpush1.msra.mxu0 %v435
      %450 = vmatprep.subr.mxu0 0.0
      %451 = vmatpush1.msra.mxu0 %v434
      %452 = vmatprep.subr.mxu0 0.0
      %453 = vmatpush1.msra.mxu0 %v433
      %454 = vmatprep.subr.mxu0 0.0
      %455 = vmatpush1.msra.mxu0 %v432
      %456 = vmatprep.subr.mxu0 0.0
      %457 = vmatpush1.msra.mxu0 %v431
      %458 = vmatprep.subr.mxu0 0.0
      %459 = vmatpush1.msra.mxu0 %v430
      %460 = vmatprep.subr.mxu0 0.0
      %461 = vmatpush1.msra.mxu0 %v429
      %462 = vmatprep.subr.mxu0 0.0
      %463 = vmatpush1.msra.mxu0 %v428
      %464 = vmatprep.subr.mxu0 0.0
      %465 = vmatpush1.msra.mxu0 %v427
      %466 = vmatprep.subr.mxu0 0.0
      %467 = vmatpush1.msra.mxu0 %v426
      %468 = vmatprep.subr.mxu0 0.0
      %469 = vmatpush1.msra.mxu0 %v425
      %470 = vmatprep.subr.mxu0 0.0
      %471 = vmatpush1.msra.mxu0 %v424
      %472 = vmatprep.subr.mxu0 0.0
      %473 = vmatpush1.msra.mxu0 %v423
      %474 = vmatprep.subr.mxu0 0.0
      %475 = vmatpush1.msra.mxu0 %v422
      %476 = vmatprep.subr.mxu0 0.0
      %477 = vmatpush1.msra.mxu0 %v421
      %478 = vmatprep.subr.mxu0 0.0
      %479 = vmatpush1.msra.mxu0 %v420
      %480 = vmatprep.subr.mxu0 0.0
      %481 = vmatpush2.msra.mxu0 0.0
      %482 = vmatprep.subr.mxu0 0.0
      %483 = vmatpush2.msra.mxu0 0.0
      %484 = vmatprep.subr.mxu0 0.0
      %485 = vmatpush2.msra.mxu0 0.0
      %486 = vmatprep.subr.mxu0 0.0
      %487 = vmatpush2.msra.mxu0 0.0
      %488 = vmatprep.subr.mxu0 0.0
      %489 = vmatpush2.msra.mxu0 0.0
      %490 = vmatprep.subr.mxu0 0.0
      %491 = vmatpush2.msra.mxu0 0.0
      %492 = vmatprep.subr.mxu0 0.0
      %493 = vmatpush2.msra.mxu0 0.0
      %494 = vmatprep.subr.mxu0 0.0
      %495 = vmatpush2.msra.mxu0 0.0
      %496 = vmatprep.subr.mxu0 0.0
      %497 = vmatpush2.msra.mxu0 0.0
      %498 = vmatprep.subr.mxu0 0.0
      %499 = vmatpush2.msra.mxu0 0.0
      %500 = vmatprep.subr.mxu0 0.0
      %501 = vmatpush2.msra.mxu0 0.0
      %502 = vmatprep.subr.mxu0 0.0
      %503 = vmatpush2.msra.mxu0 0.0
      %504 = vmatprep.subr.mxu0 0.0
      %505 = vmatpush2.msra.mxu0 %v439
      %506 = vmatprep.subr.mxu0 0.0
      %507 = vmatpush2.msra.mxu0 %v438
      %508 = vmatprep.subr.mxu0 0.0
      %509 = vmatpush2.msra.mxu0 %v437
      %510 = vmatprep.subr.mxu0 0.0
      %511 = vmatpush2.msra.mxu0 %v436
      %512 = vmatprep.mubr.f32.mxu0 %v440
      %513 = vmatmul.mubr.f32.gmra.mxu0 %v393
      %v514 = vpop.f32.mrf.mxu0
      %v515 = vadd.f32 0.0, %v514
      %v516 = vpop.f32.mrf.mxu0
      %517 = vmatprep.mubr.f32.mxu0 %v442
      %518 = vmatmul.mubr.f32.gmra.mxu0 %v399
      %v519 = vpop.f32.mrf.mxu0
      %v520 = vadd.f32 0.0, %v519
      %v521 = vpop.f32.mrf.mxu0
      %522 = vmatprep.mubr.f32.mxu0 %v444
      %523 = vmatmul.mubr.f32.gmra.mxu0 %v405
      %v524 = vpop.f32.mrf.mxu0
      %v525 = vadd.f32 0.0, %v524
      %v526 = vpop.f32.mrf.mxu0
      %527 = vmatprep.mubr.f32.mxu0 %v446
      %528 = vmatmul.mubr.f32.gmra.mxu0 %v411
      %v529 = vpop.f32.mrf.mxu0
      %v530 = vadd.f32 0.0, %v529
      %v531 = vpop.f32.mrf.mxu0
      %532 = vdwg.mxu0
      %v533 = vld [vmem:[#allocation2] sm:$0xff]
      %v534 = vld [vmem:[#allocation2 + $0x8] sm:$0xff]
      %v535 = vld [vmem:[#allocation2 + $0x10] sm:$0xff]
      %v536 = vld [vmem:[#allocation2 + $0x18] sm:$0xff]
      %v537 = vadd.f32 %v533, %v515
      %v538 = vadd.f32 %v534, %v520
      %v539 = vadd.f32 %v535, %v525
      %v540 = vadd.f32 %v536, %v530
      %541 = vst [vmem:[#allocation2] sm:$0xff] %v537
      %542 = vst [vmem:[#allocation2 + $0x8] sm:$0xff] %v538
      %543 = vst [vmem:[#allocation2 + $0x10] sm:$0xff] %v539
      %544 = vst [vmem:[#allocation2 + $0x18] sm:$0xff] %v540
      %v545 = vld [vmem:[%s210] sm:$0xfc]
      %v546 = vld [vmem:[%s210 + $0x8] sm:$0xfc]
      %v547 = vld [vmem:[%s210 + $0x10] sm:$0x3]
      %v548 = vld [vmem:[%s210 + $0x18] sm:$0x3]
      %v549 = vld [vmem:[%s210 + $0x20] sm:$0xfc]
      %v550 = vld [vmem:[%s210 + $0x28] sm:$0xfc]
      %v551 = vld [vmem:[%s210 + $0x30] sm:$0x3]
      %v552 = vld [vmem:[%s210 + $0x38] sm:$0x3]
      %v553 = vld [vmem:[%s210 + $0x40] sm:$0xfc]
      %v554 = vld [vmem:[%s210 + $0x48] sm:$0xfc]
      %v555 = vld [vmem:[%s210 + $0x50] sm:$0x3]
      %v556 = vld [vmem:[%s210 + $0x58] sm:$0x3]
      %v557 = vld [vmem:[%s210 + $0x60] sm:$0xfc]
      %v558 = vld [vmem:[%s210 + $0x68] sm:$0xfc]
      %v559 = vld [vmem:[%s210 + $0x70] sm:$0x3]
      %v560 = vld [vmem:[%s210 + $0x78] sm:$0x3]
      %vm577 = vcmask 1045504
      %v578 = vrot.slane %v545, 2
      %v579 = vrot.slane %v547, 2
      %v580 = vsel %vm577, %v578, %v579
      %v581 = vrot.slane %v546, 2
      %v582 = vrot.slane %v548, 2
      %v583 = vsel %vm577, %v581, %v582
      %v584 = vrot.slane %v549, 2
      %v585 = vrot.slane %v551, 2
      %v586 = vsel %vm577, %v584, %v585
      %v587 = vrot.slane %v550, 2
      %v588 = vrot.slane %v552, 2
      %v589 = vsel %vm577, %v587, %v588
      %v590 = vrot.slane %v553, 2
      %v591 = vrot.slane %v555, 2
      %v592 = vsel %vm577, %v590, %v591
      %v593 = vrot.slane %v554, 2
      %v594 = vrot.slane %v556, 2
      %v595 = vsel %vm577, %v593, %v594
      %v596 = vrot.slane %v557, 2
      %v597 = vrot.slane %v559, 2
      %v598 = vsel %vm577, %v596, %v597
      %v599 = vrot.slane %v558, 2
      %v600 = vrot.slane %v560, 2
      %v601 = vsel %vm577, %v599, %v600
      %s606 = scalar_lea.vmem %s1, 320
      %v607 = vld [vmem:[%s606] sm:$0xff]
      %v608 = vld [vmem:[%s606 + $0x8] sm:$0xff]
      %v609 = vld [vmem:[%s606 + $0x10] sm:$0xff]
      %v610 = vld [vmem:[%s606 + $0x18] sm:$0xff]
      %v611 = vld [vmem:[%s606 + $0x20] sm:$0xff]
      %v612 = vld [vmem:[%s606 + $0x28] sm:$0xff]
      %v613 = vld [vmem:[%s606 + $0x30] sm:$0xff]
      %v614 = vld [vmem:[%s606 + $0x38] sm:$0xff]
      %v615 = vld [vmem:[%s606 + $0x40] sm:$0xff]
      %v616 = vld [vmem:[%s606 + $0x48] sm:$0xff]
      %v617 = vld [vmem:[%s606 + $0x50] sm:$0xff]
      %v618 = vld [vmem:[%s606 + $0x58] sm:$0xff]
      %v619 = vld [vmem:[%s606 + $0x60] sm:$0xff]
      %v620 = vld [vmem:[%s606 + $0x68] sm:$0xff]
      %v621 = vld [vmem:[%s606 + $0x70] sm:$0xff]
      %v622 = vld [vmem:[%s606 + $0x78] sm:$0xff]
      %v623 = vld [vmem:[%s606 + $0x80] sm:$0xff]
      %v624 = vld [vmem:[%s606 + $0x88] sm:$0xff]
      %v625 = vld [vmem:[%s606 + $0x90] sm:$0xff]
      %v626 = vld [vmem:[%s606 + $0x98] sm:$0xff]
      %v627 = vsel %vm256, %v583, 0
      %v629 = vsel %vm256, %v589, 0
      %v631 = vsel %vm256, %v595, 0
      %v633 = vsel %vm256, %v601, 0
      %635 = vmatprep.subr.mxu0 0.0
      %636 = vmatpush1.msra.mxu0 %v622
      %637 = vmatprep.subr.mxu0 0.0
      %638 = vmatpush1.msra.mxu0 %v621
      %639 = vmatprep.subr.mxu0 0.0
      %640 = vmatpush1.msra.mxu0 %v620
      %641 = vmatprep.subr.mxu0 0.0
      %642 = vmatpush1.msra.mxu0 %v619
      %643 = vmatprep.subr.mxu0 0.0
      %644 = vmatpush1.msra.mxu0 %v618
      %645 = vmatprep.subr.mxu0 0.0
      %646 = vmatpush1.msra.mxu0 %v617
      %647 = vmatprep.subr.mxu0 0.0
      %648 = vmatpush1.msra.mxu0 %v616
      %649 = vmatprep.subr.mxu0 0.0
      %650 = vmatpush1.msra.mxu0 %v615
      %651 = vmatprep.subr.mxu0 0.0
      %652 = vmatpush1.msra.mxu0 %v614
      %653 = vmatprep.subr.mxu0 0.0
      %654 = vmatpush1.msra.mxu0 %v613
      %655 = vmatprep.subr.mxu0 0.0
      %656 = vmatpush1.msra.mxu0 %v612
      %657 = vmatprep.subr.mxu0 0.0
      %658 = vmatpush1.msra.mxu0 %v611
      %659 = vmatprep.subr.mxu0 0.0
      %660 = vmatpush1.msra.mxu0 %v610
      %661 = vmatprep.subr.mxu0 0.0
      %662 = vmatpush1.msra.mxu0 %v609
      %663 = vmatprep.subr.mxu0 0.0
      %664 = vmatpush1.msra.mxu0 %v608
      %665 = vmatprep.subr.mxu0 0.0
      %666 = vmatpush1.msra.mxu0 %v607
      %667 = vmatprep.subr.mxu0 0.0
      %668 = vmatpush2.msra.mxu0 0.0
      %669 = vmatprep.subr.mxu0 0.0
      %670 = vmatpush2.msra.mxu0 0.0
      %671 = vmatprep.subr.mxu0 0.0
      %672 = vmatpush2.msra.mxu0 0.0
      %673 = vmatprep.subr.mxu0 0.0
      %674 = vmatpush2.msra.mxu0 0.0
      %675 = vmatprep.subr.mxu0 0.0
      %676 = vmatpush2.msra.mxu0 0.0
      %677 = vmatprep.subr.mxu0 0.0
      %678 = vmatpush2.msra.mxu0 0.0
      %679 = vmatprep.subr.mxu0 0.0
      %680 = vmatpush2.msra.mxu0 0.0
      %681 = vmatprep.subr.mxu0 0.0
      %682 = vmatpush2.msra.mxu0 0.0
      %683 = vmatprep.subr.mxu0 0.0
      %684 = vmatpush2.msra.mxu0 0.0
      %685 = vmatprep.subr.mxu0 0.0
      %686 = vmatpush2.msra.mxu0 0.0
      %687 = vmatprep.subr.mxu0 0.0
      %688 = vmatpush2.msra.mxu0 0.0
      %689 = vmatprep.subr.mxu0 0.0
      %690 = vmatpush2.msra.mxu0 0.0
      %691 = vmatprep.subr.mxu0 0.0
      %692 = vmatpush2.msra.mxu0 %v626
      %693 = vmatprep.subr.mxu0 0.0
      %694 = vmatpush2.msra.mxu0 %v625
      %695 = vmatprep.subr.mxu0 0.0
      %696 = vmatpush2.msra.mxu0 %v624
      %697 = vmatprep.subr.mxu0 0.0
      %698 = vmatpush2.msra.mxu0 %v623
      %699 = vmatprep.mubr.f32.mxu0 %v627
      %700 = vmatmul.mubr.f32.gmra.mxu0 %v580
      %v701 = vpop.f32.mrf.mxu0
      %v702 = vadd.f32 0.0, %v701
      %v703 = vpop.f32.mrf.mxu0
      %704 = vmatprep.mubr.f32.mxu0 %v629
      %705 = vmatmul.mubr.f32.gmra.mxu0 %v586
      %v706 = vpop.f32.mrf.mxu0
      %v707 = vadd.f32 0.0, %v706
      %v708 = vpop.f32.mrf.mxu0
      %709 = vmatprep.mubr.f32.mxu0 %v631
      %710 = vmatmul.mubr.f32.gmra.mxu0 %v592
      %v711 = vpop.f32.mrf.mxu0
      %v712 = vadd.f32 0.0, %v711
      %v713 = vpop.f32.mrf.mxu0
      %714 = vmatprep.mubr.f32.mxu0 %v633
      %715 = vmatmul.mubr.f32.gmra.mxu0 %v598
      %v716 = vpop.f32.mrf.mxu0
      %v717 = vadd.f32 0.0, %v716
      %v718 = vpop.f32.mrf.mxu0
      %719 = vdwg.mxu0
      %v720 = vld [vmem:[#allocation2] sm:$0xff]
      %v721 = vld [vmem:[#allocation2 + $0x8] sm:$0xff]
      %v722 = vld [vmem:[#allocation2 + $0x10] sm:$0xff]
      %v723 = vld [vmem:[#allocation2 + $0x18] sm:$0xff]
      %v724 = vadd.f32 %v720, %v702
      %v725 = vadd.f32 %v721, %v707
      %v726 = vadd.f32 %v722, %v712
      %v727 = vadd.f32 %v723, %v717
      %728 = vst [vmem:[#allocation2] sm:$0xff] %v724
      %729 = vst [vmem:[#allocation2 + $0x8] sm:$0xff] %v725
      %730 = vst [vmem:[#allocation2 + $0x10] sm:$0xff] %v726
      %731 = vst [vmem:[#allocation2 + $0x18] sm:$0xff] %v727
      %s732 = scalar_lea.vmem %s210, 32
      %v733 = vld [vmem:[%s732] sm:$0xff]
      %v734 = vld [vmem:[%s732 + $0x8] sm:$0xff]
      %v735 = vld [vmem:[%s732 + $0x20] sm:$0xff]
      %v736 = vld [vmem:[%s732 + $0x28] sm:$0xff]
      %v737 = vld [vmem:[%s732 + $0x40] sm:$0xff]
      %v738 = vld [vmem:[%s732 + $0x48] sm:$0xff]
      %v739 = vld [vmem:[%s732 + $0x60] sm:$0xff]
      %v740 = vld [vmem:[%s732 + $0x68] sm:$0xff]
      %s741 = scalar_lea.vmem %s1, 480
      %v742 = vld [vmem:[%s741] sm:$0xff]
      %v743 = vld [vmem:[%s741 + $0x8] sm:$0xff]
      %v744 = vld [vmem:[%s741 + $0x10] sm:$0xff]
      %v745 = vld [vmem:[%s741 + $0x18] sm:$0xff]
      %v746 = vld [vmem:[%s741 + $0x20] sm:$0xff]
      %v747 = vld [vmem:[%s741 + $0x28] sm:$0xff]
      %v748 = vld [vmem:[%s741 + $0x30] sm:$0xff]
      %v749 = vld [vmem:[%s741 + $0x38] sm:$0xff]
      %v750 = vld [vmem:[%s741 + $0x40] sm:$0xff]
      %v751 = vld [vmem:[%s741 + $0x48] sm:$0xff]
      %v752 = vld [vmem:[%s741 + $0x50] sm:$0xff]
      %v753 = vld [vmem:[%s741 + $0x58] sm:$0xff]
      %v754 = vld [vmem:[%s741 + $0x60] sm:$0xff]
      %v755 = vld [vmem:[%s741 + $0x68] sm:$0xff]
      %v756 = vld [vmem:[%s741 + $0x70] sm:$0xff]
      %v757 = vld [vmem:[%s741 + $0x78] sm:$0xff]
      %v758 = vld [vmem:[%s741 + $0x80] sm:$0xff]
      %v759 = vld [vmem:[%s741 + $0x88] sm:$0xff]
      %v760 = vld [vmem:[%s741 + $0x90] sm:$0xff]
      %v761 = vld [vmem:[%s741 + $0x98] sm:$0xff]
      %v763 = vsel %vm256, %v734, 0
      %v766 = vsel %vm256, %v736, 0
      %v769 = vsel %vm256, %v738, 0
      %v772 = vsel %vm256, %v740, 0
      %774 = vmatprep.subr.mxu0 0.0
      %775 = vmatpush1.msra.mxu0 %v757
      %776 = vmatprep.subr.mxu0 0.0
      %777 = vmatpush1.msra.mxu0 %v756
      %778 = vmatprep.subr.mxu0 0.0
      %779 = vmatpush1.msra.mxu0 %v755
      %780 = vmatprep.subr.mxu0 0.0
      %781 = vmatpush1.msra.mxu0 %v754
      %782 = vmatprep.subr.mxu0 0.0
      %783 = vmatpush1.msra.mxu0 %v753
      %784 = vmatprep.subr.mxu0 0.0
      %785 = vmatpush1.msra.mxu0 %v752
      %786 = vmatprep.subr.mxu0 0.0
      %787 = vmatpush1.msra.mxu0 %v751
      %788 = vmatprep.subr.mxu0 0.0
      %789 = vmatpush1.msra.mxu0 %v750
      %790 = vmatprep.subr.mxu0 0.0
      %791 = vmatpush1.msra.mxu0 %v749
      %792 = vmatprep.subr.mxu0 0.0
      %793 = vmatpush1.msra.mxu0 %v748
      %794 = vmatprep.subr.mxu0 0.0
      %795 = vmatpush1.msra.mxu0 %v747
      %796 = vmatprep.subr.mxu0 0.0
      %797 = vmatpush1.msra.mxu0 %v746
      %798 = vmatprep.subr.mxu0 0.0
      %799 = vmatpush1.msra.mxu0 %v745
      %800 = vmatprep.subr.mxu0 0.0
      %801 = vmatpush1.msra.mxu0 %v744
      %802 = vmatprep.subr.mxu0 0.0
      %803 = vmatpush1.msra.mxu0 %v743
      %804 = vmatprep.subr.mxu0 0.0
      %805 = vmatpush1.msra.mxu0 %v742
      %806 = vmatprep.subr.mxu0 0.0
      %807 = vmatpush2.msra.mxu0 0.0
      %808 = vmatprep.subr.mxu0 0.0
      %809 = vmatpush2.msra.mxu0 0.0
      %810 = vmatprep.subr.mxu0 0.0
      %811 = vmatpush2.msra.mxu0 0.0
      %812 = vmatprep.subr.mxu0 0.0
      %813 = vmatpush2.msra.mxu0 0.0
      %814 = vmatprep.subr.mxu0 0.0
      %815 = vmatpush2.msra.mxu0 0.0
      %816 = vmatprep.subr.mxu0 0.0
      %817 = vmatpush2.msra.mxu0 0.0
      %818 = vmatprep.subr.mxu0 0.0
      %819 = vmatpush2.msra.mxu0 0.0
      %820 = vmatprep.subr.mxu0 0.0
      %821 = vmatpush2.msra.mxu0 0.0
      %822 = vmatprep.subr.mxu0 0.0
      %823 = vmatpush2.msra.mxu0 0.0
      %824 = vmatprep.subr.mxu0 0.0
      %825 = vmatpush2.msra.mxu0 0.0
      %826 = vmatprep.subr.mxu0 0.0
      %827 = vmatpush2.msra.mxu0 0.0
      %828 = vmatprep.subr.mxu0 0.0
      %829 = vmatpush2.msra.mxu0 0.0
      %830 = vmatprep.subr.mxu0 0.0
      %831 = vmatpush2.msra.mxu0 %v761
      %832 = vmatprep.subr.mxu0 0.0
      %833 = vmatpush2.msra.mxu0 %v760
      %834 = vmatprep.subr.mxu0 0.0
      %835 = vmatpush2.msra.mxu0 %v759
      %836 = vmatprep.subr.mxu0 0.0
      %837 = vmatpush2.msra.mxu0 %v758
      %838 = vmatprep.mubr.f32.mxu0 %v763
      %839 = vmatmul.mubr.f32.gmra.mxu0 %v733
      %v840 = vpop.f32.mrf.mxu0
      %v841 = vadd.f32 0.0, %v840
      %v842 = vpop.f32.mrf.mxu0
      %843 = vmatprep.mubr.f32.mxu0 %v766
      %844 = vmatmul.mubr.f32.gmra.mxu0 %v735
      %v845 = vpop.f32.mrf.mxu0
      %v846 = vadd.f32 0.0, %v845
      %v847 = vpop.f32.mrf.mxu0
      %848 = vmatprep.mubr.f32.mxu0 %v769
      %849 = vmatmul.mubr.f32.gmra.mxu0 %v737
      %v850 = vpop.f32.mrf.mxu0
      %v851 = vadd.f32 0.0, %v850
      %v852 = vpop.f32.mrf.mxu0
      %853 = vmatprep.mubr.f32.mxu0 %v772
      %854 = vmatmul.mubr.f32.gmra.mxu0 %v739
      %v855 = vpop.f32.mrf.mxu0
      %v856 = vadd.f32 0.0, %v855
      %v857 = vpop.f32.mrf.mxu0
      %858 = vdwg.mxu0
      %v859 = vld [vmem:[#allocation2] sm:$0xff]
      %v860 = vld [vmem:[#allocation2 + $0x8] sm:$0xff]
      %v861 = vld [vmem:[#allocation2 + $0x10] sm:$0xff]
      %v862 = vld [vmem:[#allocation2 + $0x18] sm:$0xff]
      %v863 = vadd.f32 %v859, %v841
      %v864 = vadd.f32 %v860, %v846
      %v865 = vadd.f32 %v861, %v851
      %v866 = vadd.f32 %v862, %v856
      %867 = vst [vmem:[#allocation2] sm:$0xff] %v863
      %868 = vst [vmem:[#allocation2 + $0x8] sm:$0xff] %v864
      %869 = vst [vmem:[#allocation2 + $0x10] sm:$0xff] %v865
      %870 = vst [vmem:[#allocation2 + $0x18] sm:$0xff] %v866
      %v871 = vld [vmem:[%s732] sm:$0xfe]
      %v872 = vld [vmem:[%s732 + $0x8] sm:$0xfe]
      %v873 = vld [vmem:[%s732 + $0x10] sm:$0x1]
      %v874 = vld [vmem:[%s732 + $0x18] sm:$0x1]
      %v875 = vld [vmem:[%s732 + $0x20] sm:$0xfe]
      %v876 = vld [vmem:[%s732 + $0x28] sm:$0xfe]
      %v877 = vld [vmem:[%s732 + $0x30] sm:$0x1]
      %v878 = vld [vmem:[%s732 + $0x38] sm:$0x1]
      %v879 = vld [vmem:[%s732 + $0x40] sm:$0xfe]
      %v880 = vld [vmem:[%s732 + $0x48] sm:$0xfe]
      %v881 = vld [vmem:[%s732 + $0x50] sm:$0x1]
      %v882 = vld [vmem:[%s732 + $0x58] sm:$0x1]
      %v883 = vld [vmem:[%s732 + $0x60] sm:$0xfe]
      %v884 = vld [vmem:[%s732 + $0x68] sm:$0xfe]
      %v885 = vld [vmem:[%s732 + $0x70] sm:$0x1]
      %v886 = vld [vmem:[%s732 + $0x78] sm:$0x1]
      %v903 = vrot.slane %v871, 1
      %v904 = vrot.slane %v873, 1
      %v905 = vsel %vm390, %v903, %v904
      %v906 = vrot.slane %v872, 1
      %v907 = vrot.slane %v874, 1
      %v908 = vsel %vm390, %v906, %v907
      %v909 = vrot.slane %v875, 1
      %v910 = vrot.slane %v877, 1
      %v911 = vsel %vm390, %v909, %v910
      %v912 = vrot.slane %v876, 1
      %v913 = vrot.slane %v878, 1
      %v914 = vsel %vm390, %v912, %v913
      %v915 = vrot.slane %v879, 1
      %v916 = vrot.slane %v881, 1
      %v917 = vsel %vm390, %v915, %v916
      %v918 = vrot.slane %v880, 1
      %v919 = vrot.slane %v882, 1
      %v920 = vsel %vm390, %v918, %v919
      %v921 = vrot.slane %v883, 1
      %v922 = vrot.slane %v885, 1
      %v923 = vsel %vm390, %v921, %v922
      %v924 = vrot.slane %v884, 1
      %v925 = vrot.slane %v886, 1
      %v926 = vsel %vm390, %v924, %v925
      %s931 = scalar_lea.vmem %s1, 640
      %v932 = vld [vmem:[%s931] sm:$0xff]
      %v933 = vld [vmem:[%s931 + $0x8] sm:$0xff]
      %v934 = vld [vmem:[%s931 + $0x10] sm:$0xff]
      %v935 = vld [vmem:[%s931 + $0x18] sm:$0xff]
      %v936 = vld [vmem:[%s931 + $0x20] sm:$0xff]
      %v937 = vld [vmem:[%s931 + $0x28] sm:$0xff]
      %v938 = vld [vmem:[%s931 + $0x30] sm:$0xff]
      %v939 = vld [vmem:[%s931 + $0x38] sm:$0xff]
      %v940 = vld [vmem:[%s931 + $0x40] sm:$0xff]
      %v941 = vld [vmem:[%s931 + $0x48] sm:$0xff]
      %v942 = vld [vmem:[%s931 + $0x50] sm:$0xff]
      %v943 = vld [vmem:[%s931 + $0x58] sm:$0xff]
      %v944 = vld [vmem:[%s931 + $0x60] sm:$0xff]
      %v945 = vld [vmem:[%s931 + $0x68] sm:$0xff]
      %v946 = vld [vmem:[%s931 + $0x70] sm:$0xff]
      %v947 = vld [vmem:[%s931 + $0x78] sm:$0xff]
      %v948 = vld [vmem:[%s931 + $0x80] sm:$0xff]
      %v949 = vld [vmem:[%s931 + $0x88] sm:$0xff]
      %v950 = vld [vmem:[%s931 + $0x90] sm:$0xff]
      %v951 = vld [vmem:[%s931 + $0x98] sm:$0xff]
      %v952 = vsel %vm256, %v908, 0
      %v954 = vsel %vm256, %v914, 0
      %v956 = vsel %vm256, %v920, 0
      %v958 = vsel %vm256, %v926, 0
      %960 = vmatprep.subr.mxu0 0.0
      %961 = vmatpush1.msra.mxu0 %v947
      %962 = vmatprep.subr.mxu0 0.0
      %963 = vmatpush1.msra.mxu0 %v946
      %964 = vmatprep.subr.mxu0 0.0
      %965 = vmatpush1.msra.mxu0 %v945
      %966 = vmatprep.subr.mxu0 0.0
      %967 = vmatpush1.msra.mxu0 %v944
      %968 = vmatprep.subr.mxu0 0.0
      %969 = vmatpush1.msra.mxu0 %v943
      %970 = vmatprep.subr.mxu0 0.0
      %971 = vmatpush1.msra.mxu0 %v942
      %972 = vmatprep.subr.mxu0 0.0
      %973 = vmatpush1.msra.mxu0 %v941
      %974 = vmatprep.subr.mxu0 0.0
      %975 = vmatpush1.msra.mxu0 %v940
      %976 = vmatprep.subr.mxu0 0.0
      %977 = vmatpush1.msra.mxu0 %v939
      %978 = vmatprep.subr.mxu0 0.0
      %979 = vmatpush1.msra.mxu0 %v938
      %980 = vmatprep.subr.mxu0 0.0
      %981 = vmatpush1.msra.mxu0 %v937
      %982 = vmatprep.subr.mxu0 0.0
      %983 = vmatpush1.msra.mxu0 %v936
      %984 = vmatprep.subr.mxu0 0.0
      %985 = vmatpush1.msra.mxu0 %v935
      %986 = vmatprep.subr.mxu0 0.0
      %987 = vmatpush1.msra.mxu0 %v934
      %988 = vmatprep.subr.mxu0 0.0
      %989 = vmatpush1.msra.mxu0 %v933
      %990 = vmatprep.subr.mxu0 0.0
      %991 = vmatpush1.msra.mxu0 %v932
      %992 = vmatprep.subr.mxu0 0.0
      %993 = vmatpush2.msra.mxu0 0.0
      %994 = vmatprep.subr.mxu0 0.0
      %995 = vmatpush2.msra.mxu0 0.0
      %996 = vmatprep.subr.mxu0 0.0
      %997 = vmatpush2.msra.mxu0 0.0
      %998 = vmatprep.subr.mxu0 0.0
      %999 = vmatpush2.msra.mxu0 0.0
      %1000 = vmatprep.subr.mxu0 0.0
      %1001 = vmatpush2.msra.mxu0 0.0
      %1002 = vmatprep.subr.mxu0 0.0
      %1003 = vmatpush2.msra.mxu0 0.0
      %1004 = vmatprep.subr.mxu0 0.0
      %1005 = vmatpush2.msra.mxu0 0.0
      %1006 = vmatprep.subr.mxu0 0.0
      %1007 = vmatpush2.msra.mxu0 0.0
      %1008 = vmatprep.subr.mxu0 0.0
      %1009 = vmatpush2.msra.mxu0 0.0
      %1010 = vmatprep.subr.mxu0 0.0
      %1011 = vmatpush2.msra.mxu0 0.0
      %1012 = vmatprep.subr.mxu0 0.0
      %1013 = vmatpush2.msra.mxu0 0.0
      %1014 = vmatprep.subr.mxu0 0.0
      %1015 = vmatpush2.msra.mxu0 0.0
      %1016 = vmatprep.subr.mxu0 0.0
      %1017 = vmatpush2.msra.mxu0 %v951
      %1018 = vmatprep.subr.mxu0 0.0
      %1019 = vmatpush2.msra.mxu0 %v950
      %1020 = vmatprep.subr.mxu0 0.0
      %1021 = vmatpush2.msra.mxu0 %v949
      %1022 = vmatprep.subr.mxu0 0.0
      %1023 = vmatpush2.msra.mxu0 %v948
      %1024 = vmatprep.mubr.f32.mxu0 %v952
      %1025 = vmatmul.mubr.f32.gmra.mxu0 %v905
      %v1026 = vpop.f32.mrf.mxu0
      %v1027 = vadd.f32 0.0, %v1026
      %v1028 = vpop.f32.mrf.mxu0
      %1029 = vmatprep.mubr.f32.mxu0 %v954
      %1030 = vmatmul.mubr.f32.gmra.mxu0 %v911
      %v1031 = vpop.f32.mrf.mxu0
      %v1032 = vadd.f32 0.0, %v1031
      %v1033 = vpop.f32.mrf.mxu0
      %1034 = vmatprep.mubr.f32.mxu0 %v956
      %1035 = vmatmul.mubr.f32.gmra.mxu0 %v917
      %v1036 = vpop.f32.mrf.mxu0
      %v1037 = vadd.f32 0.0, %v1036
      %v1038 = vpop.f32.mrf.mxu0
      %1039 = vmatprep.mubr.f32.mxu0 %v958
      %1040 = vmatmul.mubr.f32.gmra.mxu0 %v923
      %v1041 = vpop.f32.mrf.mxu0
      %v1042 = vadd.f32 0.0, %v1041
      %v1043 = vpop.f32.mrf.mxu0
      %1044 = vdwg.mxu0
      %v1045 = vld [vmem:[#allocation2] sm:$0xff]
      %v1046 = vld [vmem:[#allocation2 + $0x8] sm:$0xff]
      %v1047 = vld [vmem:[#allocation2 + $0x10] sm:$0xff]
      %v1048 = vld [vmem:[#allocation2 + $0x18] sm:$0xff]
      %v1049 = vadd.f32 %v1045, %v1027
      %v1050 = vadd.f32 %v1046, %v1032
      %v1051 = vadd.f32 %v1047, %v1037
      %v1052 = vadd.f32 %v1048, %v1042
      %1053 = vst [vmem:[#allocation2] sm:$0xff] %v1049
      %1054 = vst [vmem:[#allocation2 + $0x8] sm:$0xff] %v1050
      %1055 = vst [vmem:[#allocation2 + $0x10] sm:$0xff] %v1051
      %1056 = vst [vmem:[#allocation2 + $0x18] sm:$0xff] %v1052
      %v1057 = vld [vmem:[%s732] sm:$0xfc]
      %v1058 = vld [vmem:[%s732 + $0x8] sm:$0xfc]
      %v1059 = vld [vmem:[%s732 + $0x10] sm:$0x3]
      %v1060 = vld [vmem:[%s732 + $0x18] sm:$0x3]
      %v1061 = vld [vmem:[%s732 + $0x20] sm:$0xfc]
      %v1062 = vld [vmem:[%s732 + $0x28] sm:$0xfc]
      %v1063 = vld [vmem:[%s732 + $0x30] sm:$0x3]
      %v1064 = vld [vmem:[%s732 + $0x38] sm:$0x3]
      %v1065 = vld [vmem:[%s732 + $0x40] sm:$0xfc]
      %v1066 = vld [vmem:[%s732 + $0x48] sm:$0xfc]
      %v1067 = vld [vmem:[%s732 + $0x50] sm:$0x3]
      %v1068 = vld [vmem:[%s732 + $0x58] sm:$0x3]
      %v1069 = vld [vmem:[%s732 + $0x60] sm:$0xfc]
      %v1070 = vld [vmem:[%s732 + $0x68] sm:$0xfc]
      %v1071 = vld [vmem:[%s732 + $0x70] sm:$0x3]
      %v1072 = vld [vmem:[%s732 + $0x78] sm:$0x3]
      %v1089 = vrot.slane %v1057, 2
      %v1090 = vrot.slane %v1059, 2
      %v1091 = vsel %vm577, %v1089, %v1090
      %v1092 = vrot.slane %v1058, 2
      %v1093 = vrot.slane %v1060, 2
      %v1094 = vsel %vm577, %v1092, %v1093
      %v1095 = vrot.slane %v1061, 2
      %v1096 = vrot.slane %v1063, 2
      %v1097 = vsel %vm577, %v1095, %v1096
      %v1098 = vrot.slane %v1062, 2
      %v1099 = vrot.slane %v1064, 2
      %v1100 = vsel %vm577, %v1098, %v1099
      %v1101 = vrot.slane %v1065, 2
      %v1102 = vrot.slane %v1067, 2
      %v1103 = vsel %vm577, %v1101, %v1102
      %v1104 = vrot.slane %v1066, 2
      %v1105 = vrot.slane %v1068, 2
      %v1106 = vsel %vm577, %v1104, %v1105
      %v1107 = vrot.slane %v1069, 2
      %v1108 = vrot.slane %v1071, 2
      %v1109 = vsel %vm577, %v1107, %v1108
      %v1110 = vrot.slane %v1070, 2
      %v1111 = vrot.slane %v1072, 2
      %v1112 = vsel %vm577, %v1110, %v1111
      %s1117 = scalar_lea.vmem %s1, 800
      %v1118 = vld [vmem:[%s1117] sm:$0xff]
      %v1119 = vld [vmem:[%s1117 + $0x8] sm:$0xff]
      %v1120 = vld [vmem:[%s1117 + $0x10] sm:$0xff]
      %v1121 = vld [vmem:[%s1117 + $0x18] sm:$0xff]
      %v1122 = vld [vmem:[%s1117 + $0x20] sm:$0xff]
      %v1123 = vld [vmem:[%s1117 + $0x28] sm:$0xff]
      %v1124 = vld [vmem:[%s1117 + $0x30] sm:$0xff]
      %v1125 = vld [vmem:[%s1117 + $0x38] sm:$0xff]
      %v1126 = vld [vmem:[%s1117 + $0x40] sm:$0xff]
      %v1127 = vld [vmem:[%s1117 + $0x48] sm:$0xff]
      %v1128 = vld [vmem:[%s1117 + $0x50] sm:$0xff]
      %v1129 = vld [vmem:[%s1117 + $0x58] sm:$0xff]
      %v1130 = vld [vmem:[%s1117 + $0x60] sm:$0xff]
      %v1131 = vld [vmem:[%s1117 + $0x68] sm:$0xff]
      %v1132 = vld [vmem:[%s1117 + $0x70] sm:$0xff]
      %v1133 = vld [vmem:[%s1117 + $0x78] sm:$0xff]
      %v1134 = vld [vmem:[%s1117 + $0x80] sm:$0xff]
      %v1135 = vld [vmem:[%s1117 + $0x88] sm:$0xff]
      %v1136 = vld [vmem:[%s1117 + $0x90] sm:$0xff]
      %v1137 = vld [vmem:[%s1117 + $0x98] sm:$0xff]
      %v1138 = vsel %vm256, %v1094, 0
      %v1140 = vsel %vm256, %v1100, 0
      %v1142 = vsel %vm256, %v1106, 0
      %v1144 = vsel %vm256, %v1112, 0
      %1146 = vmatprep.subr.mxu0 0.0
      %1147 = vmatpush1.msra.mxu0 %v1133
      %1148 = vmatprep.subr.mxu0 0.0
      %1149 = vmatpush1.msra.mxu0 %v1132
      %1150 = vmatprep.subr.mxu0 0.0
      %1151 = vmatpush1.msra.mxu0 %v1131
      %1152 = vmatprep.subr.mxu0 0.0
      %1153 = vmatpush1.msra.mxu0 %v1130
      %1154 = vmatprep.subr.mxu0 0.0
      %1155 = vmatpush1.msra.mxu0 %v1129
      %1156 = vmatprep.subr.mxu0 0.0
      %1157 = vmatpush1.msra.mxu0 %v1128
      %1158 = vmatprep.subr.mxu0 0.0
      %1159 = vmatpush1.msra.mxu0 %v1127
      %1160 = vmatprep.subr.mxu0 0.0
      %1161 = vmatpush1.msra.mxu0 %v1126
      %1162 = vmatprep.subr.mxu0 0.0
      %1163 = vmatpush1.msra.mxu0 %v1125
      %1164 = vmatprep.subr.mxu0 0.0
      %1165 = vmatpush1.msra.mxu0 %v1124
      %1166 = vmatprep.subr.mxu0 0.0
      %1167 = vmatpush1.msra.mxu0 %v1123
      %1168 = vmatprep.subr.mxu0 0.0
      %1169 = vmatpush1.msra.mxu0 %v1122
      %1170 = vmatprep.subr.mxu0 0.0
      %1171 = vmatpush1.msra.mxu0 %v1121
      %1172 = vmatprep.subr.mxu0 0.0
      %1173 = vmatpush1.msra.mxu0 %v1120
      %1174 = vmatprep.subr.mxu0 0.0
      %1175 = vmatpush1.msra.mxu0 %v1119
      %1176 = vmatprep.subr.mxu0 0.0
      %1177 = vmatpush1.msra.mxu0 %v1118
      %1178 = vmatprep.subr.mxu0 0.0
      %1179 = vmatpush2.msra.mxu0 0.0
      %1180 = vmatprep.subr.mxu0 0.0
      %1181 = vmatpush2.msra.mxu0 0.0
      %1182 = vmatprep.subr.mxu0 0.0
      %1183 = vmatpush2.msra.mxu0 0.0
      %1184 = vmatprep.subr.mxu0 0.0
      %1185 = vmatpush2.msra.mxu0 0.0
      %1186 = vmatprep.subr.mxu0 0.0
      %1187 = vmatpush2.msra.mxu0 0.0
      %1188 = vmatprep.subr.mxu0 0.0
      %1189 = vmatpush2.msra.mxu0 0.0
      %1190 = vmatprep.subr.mxu0 0.0
      %1191 = vmatpush2.msra.mxu0 0.0
      %1192 = vmatprep.subr.mxu0 0.0
      %1193 = vmatpush2.msra.mxu0 0.0
      %1194 = vmatprep.subr.mxu0 0.0
      %1195 = vmatpush2.msra.mxu0 0.0
      %1196 = vmatprep.subr.mxu0 0.0
      %1197 = vmatpush2.msra.mxu0 0.0
      %1198 = vmatprep.subr.mxu0 0.0
      %1199 = vmatpush2.msra.mxu0 0.0
      %1200 = vmatprep.subr.mxu0 0.0
      %1201 = vmatpush2.msra.mxu0 0.0
      %1202 = vmatprep.subr.mxu0 0.0
      %1203 = vmatpush2.msra.mxu0 %v1137
      %1204 = vmatprep.subr.mxu0 0.0
      %1205 = vmatpush2.msra.mxu0 %v1136
      %1206 = vmatprep.subr.mxu0 0.0
      %1207 = vmatpush2.msra.mxu0 %v1135
      %1208 = vmatprep.subr.mxu0 0.0
      %1209 = vmatpush2.msra.mxu0 %v1134
      %1210 = vmatprep.mubr.f32.mxu0 %v1138
      %1211 = vmatmul.mubr.f32.gmra.mxu0 %v1091
      %v1212 = vpop.f32.mrf.mxu0
      %v1213 = vadd.f32 0.0, %v1212
      %v1214 = vpop.f32.mrf.mxu0
      %1215 = vmatprep.mubr.f32.mxu0 %v1140
      %1216 = vmatmul.mubr.f32.gmra.mxu0 %v1097
      %v1217 = vpop.f32.mrf.mxu0
      %v1218 = vadd.f32 0.0, %v1217
      %v1219 = vpop.f32.mrf.mxu0
      %1220 = vmatprep.mubr.f32.mxu0 %v1142
      %1221 = vmatmul.mubr.f32.gmra.mxu0 %v1103
      %v1222 = vpop.f32.mrf.mxu0
      %v1223 = vadd.f32 0.0, %v1222
      %v1224 = vpop.f32.mrf.mxu0
      %1225 = vmatprep.mubr.f32.mxu0 %v1144
      %1226 = vmatmul.mubr.f32.gmra.mxu0 %v1109
      %v1227 = vpop.f32.mrf.mxu0
      %v1228 = vadd.f32 0.0, %v1227
      %v1229 = vpop.f32.mrf.mxu0
      %1230 = vdwg.mxu0
      %v1231 = vld [vmem:[#allocation2] sm:$0xff]
      %v1232 = vld [vmem:[#allocation2 + $0x8] sm:$0xff]
      %v1233 = vld [vmem:[#allocation2 + $0x10] sm:$0xff]
      %v1234 = vld [vmem:[#allocation2 + $0x18] sm:$0xff]
      %v1235 = vadd.f32 %v1231, %v1213
      %v1236 = vadd.f32 %v1232, %v1218
      %v1237 = vadd.f32 %v1233, %v1223
      %v1238 = vadd.f32 %v1234, %v1228
      %1239 = vst [vmem:[#allocation2] sm:$0xff] %v1235
      %1240 = vst [vmem:[#allocation2 + $0x8] sm:$0xff] %v1236
      %1241 = vst [vmem:[#allocation2 + $0x10] sm:$0xff] %v1237
      %1242 = vst [vmem:[#allocation2 + $0x18] sm:$0xff] %v1238
      %s1243 = scalar_lea.vmem %s210, 64
      %v1244 = vld [vmem:[%s1243] sm:$0xff]
      %v1245 = vld [vmem:[%s1243 + $0x8] sm:$0xff]
      %v1246 = vld [vmem:[%s1243 + $0x20] sm:$0xff]
      %v1247 = vld [vmem:[%s1243 + $0x28] sm:$0xff]
      %v1248 = vld [vmem:[%s1243 + $0x40] sm:$0xff]
      %v1249 = vld [vmem:[%s1243 + $0x48] sm:$0xff]
      %v1250 = vld [vmem:[%s1243 + $0x60] sm:$0xff]
      %v1251 = vld [vmem:[%s1243 + $0x68] sm:$0xff]
      %s1252 = scalar_lea.vmem %s1, 960
      %v1253 = vld [vmem:[%s1252] sm:$0xff]
      %v1254 = vld [vmem:[%s1252 + $0x8] sm:$0xff]
      %v1255 = vld [vmem:[%s1252 + $0x10] sm:$0xff]
      %v1256 = vld [vmem:[%s1252 + $0x18] sm:$0xff]
      %v1257 = vld [vmem:[%s1252 + $0x20] sm:$0xff]
      %v1258 = vld [vmem:[%s1252 + $0x28] sm:$0xff]
      %v1259 = vld [vmem:[%s1252 + $0x30] sm:$0xff]
      %v1260 = vld [vmem:[%s1252 + $0x38] sm:$0xff]
      %v1261 = vld [vmem:[%s1252 + $0x40] sm:$0xff]
      %v1262 = vld [vmem:[%s1252 + $0x48] sm:$0xff]
      %v1263 = vld [vmem:[%s1252 + $0x50] sm:$0xff]
      %v1264 = vld [vmem:[%s1252 + $0x58] sm:$0xff]
      %v1265 = vld [vmem:[%s1252 + $0x60] sm:$0xff]
      %v1266 = vld [vmem:[%s1252 + $0x68] sm:$0xff]
      %v1267 = vld [vmem:[%s1252 + $0x70] sm:$0xff]
      %v1268 = vld [vmem:[%s1252 + $0x78] sm:$0xff]
      %v1269 = vld [vmem:[%s1252 + $0x80] sm:$0xff]
      %v1270 = vld [vmem:[%s1252 + $0x88] sm:$0xff]
      %v1271 = vld [vmem:[%s1252 + $0x90] sm:$0xff]
      %v1272 = vld [vmem:[%s1252 + $0x98] sm:$0xff]
      %v1274 = vsel %vm256, %v1245, 0
      %v1277 = vsel %vm256, %v1247, 0
      %v1280 = vsel %vm256, %v1249, 0
      %v1283 = vsel %vm256, %v1251, 0
      %1285 = vmatprep.subr.mxu0 0.0
      %1286 = vmatpush1.msra.mxu0 %v1268
      %1287 = vmatprep.subr.mxu0 0.0
      %1288 = vmatpush1.msra.mxu0 %v1267
      %1289 = vmatprep.subr.mxu0 0.0
      %1290 = vmatpush1.msra.mxu0 %v1266
      %1291 = vmatprep.subr.mxu0 0.0
      %1292 = vmatpush1.msra.mxu0 %v1265
      %1293 = vmatprep.subr.mxu0 0.0
      %1294 = vmatpush1.msra.mxu0 %v1264
      %1295 = vmatprep.subr.mxu0 0.0
      %1296 = vmatpush1.msra.mxu0 %v1263
      %1297 = vmatprep.subr.mxu0 0.0
      %1298 = vmatpush1.msra.mxu0 %v1262
      %1299 = vmatprep.subr.mxu0 0.0
      %1300 = vmatpush1.msra.mxu0 %v1261
      %1301 = vmatprep.subr.mxu0 0.0
      %1302 = vmatpush1.msra.mxu0 %v1260
      %1303 = vmatprep.subr.mxu0 0.0
      %1304 = vmatpush1.msra.mxu0 %v1259
      %1305 = vmatprep.subr.mxu0 0.0
      %1306 = vmatpush1.msra.mxu0 %v1258
      %1307 = vmatprep.subr.mxu0 0.0
      %1308 = vmatpush1.msra.mxu0 %v1257
      %1309 = vmatprep.subr.mxu0 0.0
      %1310 = vmatpush1.msra.mxu0 %v1256
      %1311 = vmatprep.subr.mxu0 0.0
      %1312 = vmatpush1.msra.mxu0 %v1255
      %1313 = vmatprep.subr.mxu0 0.0
      %1314 = vmatpush1.msra.mxu0 %v1254
      %1315 = vmatprep.subr.mxu0 0.0
      %1316 = vmatpush1.msra.mxu0 %v1253
      %1317 = vmatprep.subr.mxu0 0.0
      %1318 = vmatpush2.msra.mxu0 0.0
      %1319 = vmatprep.subr.mxu0 0.0
      %1320 = vmatpush2.msra.mxu0 0.0
      %1321 = vmatprep.subr.mxu0 0.0
      %1322 = vmatpush2.msra.mxu0 0.0
      %1323 = vmatprep.subr.mxu0 0.0
      %1324 = vmatpush2.msra.mxu0 0.0
      %1325 = vmatprep.subr.mxu0 0.0
      %1326 = vmatpush2.msra.mxu0 0.0
      %1327 = vmatprep.subr.mxu0 0.0
      %1328 = vmatpush2.msra.mxu0 0.0
      %1329 = vmatprep.subr.mxu0 0.0
      %1330 = vmatpush2.msra.mxu0 0.0
      %1331 = vmatprep.subr.mxu0 0.0
      %1332 = vmatpush2.msra.mxu0 0.0
      %1333 = vmatprep.subr.mxu0 0.0
      %1334 = vmatpush2.msra.mxu0 0.0
      %1335 = vmatprep.subr.mxu0 0.0
      %1336 = vmatpush2.msra.mxu0 0.0
      %1337 = vmatprep.subr.mxu0 0.0
      %1338 = vmatpush2.msra.mxu0 0.0
      %1339 = vmatprep.subr.mxu0 0.0
      %1340 = vmatpush2.msra.mxu0 0.0
      %1341 = vmatprep.subr.mxu0 0.0
      %1342 = vmatpush2.msra.mxu0 %v1272
      %1343 = vmatprep.subr.mxu0 0.0
      %1344 = vmatpush2.msra.mxu0 %v1271
      %1345 = vmatprep.subr.mxu0 0.0
      %1346 = vmatpush2.msra.mxu0 %v1270
      %1347 = vmatprep.subr.mxu0 0.0
      %1348 = vmatpush2.msra.mxu0 %v1269
      %1349 = vmatprep.mubr.f32.mxu0 %v1274
      %1350 = vmatmul.mubr.f32.gmra.mxu0 %v1244
      %v1351 = vpop.f32.mrf.mxu0
      %v1352 = vadd.f32 0.0, %v1351
      %v1353 = vpop.f32.mrf.mxu0
      %1354 = vmatprep.mubr.f32.mxu0 %v1277
      %1355 = vmatmul.mubr.f32.gmra.mxu0 %v1246
      %v1356 = vpop.f32.mrf.mxu0
      %v1357 = vadd.f32 0.0, %v1356
      %v1358 = vpop.f32.mrf.mxu0
      %1359 = vmatprep.mubr.f32.mxu0 %v1280
      %1360 = vmatmul.mubr.f32.gmra.mxu0 %v1248
      %v1361 = vpop.f32.mrf.mxu0
      %v1362 = vadd.f32 0.0, %v1361
      %v1363 = vpop.f32.mrf.mxu0
      %1364 = vmatprep.mubr.f32.mxu0 %v1283
      %1365 = vmatmul.mubr.f32.gmra.mxu0 %v1250
      %v1366 = vpop.f32.mrf.mxu0
      %v1367 = vadd.f32 0.0, %v1366
      %v1368 = vpop.f32.mrf.mxu0
      %1369 = vdwg.mxu0
      %v1370 = vld [vmem:[#allocation2] sm:$0xff]
      %v1371 = vld [vmem:[#allocation2 + $0x8] sm:$0xff]
      %v1372 = vld [vmem:[#allocation2 + $0x10] sm:$0xff]
      %v1373 = vld [vmem:[#allocation2 + $0x18] sm:$0xff]
      %v1374 = vadd.f32 %v1370, %v1352
      %v1375 = vadd.f32 %v1371, %v1357
      %v1376 = vadd.f32 %v1372, %v1362
      %v1377 = vadd.f32 %v1373, %v1367
      %1378 = vst [vmem:[#allocation2] sm:$0xff] %v1374
      %1379 = vst [vmem:[#allocation2 + $0x8] sm:$0xff] %v1375
      %1380 = vst [vmem:[#allocation2 + $0x10] sm:$0xff] %v1376
      %1381 = vst [vmem:[#allocation2 + $0x18] sm:$0xff] %v1377
      %v1382 = vld [vmem:[%s1243] sm:$0xfe]
      %v1383 = vld [vmem:[%s1243 + $0x8] sm:$0xfe]
      %v1384 = vld [vmem:[%s1243 + $0x10] sm:$0x1]
      %v1385 = vld [vmem:[%s1243 + $0x18] sm:$0x1]
      %v1386 = vld [vmem:[%s1243 + $0x20] sm:$0xfe]
      %v1387 = vld [vmem:[%s1243 + $0x28] sm:$0xfe]
      %v1388 = vld [vmem:[%s1243 + $0x30] sm:$0x1]
      %v1389 = vld [vmem:[%s1243 + $0x38] sm:$0x1]
      %v1390 = vld [vmem:[%s1243 + $0x40] sm:$0xfe]
      %v1391 = vld [vmem:[%s1243 + $0x48] sm:$0xfe]
      %v1392 = vld [vmem:[%s1243 + $0x50] sm:$0x1]
      %v1393 = vld [vmem:[%s1243 + $0x58] sm:$0x1]
      %v1394 = vld [vmem:[%s1243 + $0x60] sm:$0xfe]
      %v1395 = vld [vmem:[%s1243 + $0x68] sm:$0xfe]
      %v1396 = vld [vmem:[%s1243 + $0x70] sm:$0x1]
      %v1397 = vld [vmem:[%s1243 + $0x78] sm:$0x1]
      %v1414 = vrot.slane %v1382, 1
      %v1415 = vrot.slane %v1384, 1
      %v1416 = vsel %vm390, %v1414, %v1415
      %v1417 = vrot.slane %v1383, 1
      %v1418 = vrot.slane %v1385, 1
      %v1419 = vsel %vm390, %v1417, %v1418
      %v1420 = vrot.slane %v1386, 1
      %v1421 = vrot.slane %v1388, 1
      %v1422 = vsel %vm390, %v1420, %v1421
      %v1423 = vrot.slane %v1387, 1
      %v1424 = vrot.slane %v1389, 1
      %v1425 = vsel %vm390, %v1423, %v1424
      %v1426 = vrot.slane %v1390, 1
      %v1427 = vrot.slane %v1392, 1
      %v1428 = vsel %vm390, %v1426, %v1427
      %v1429 = vrot.slane %v1391, 1
      %v1430 = vrot.slane %v1393, 1
      %v1431 = vsel %vm390, %v1429, %v1430
      %v1432 = vrot.slane %v1394, 1
      %v1433 = vrot.slane %v1396, 1
      %v1434 = vsel %vm390, %v1432, %v1433
      %v1435 = vrot.slane %v1395, 1
      %v1436 = vrot.slane %v1397, 1
      %v1437 = vsel %vm390, %v1435, %v1436
      %s1442 = scalar_lea.vmem %s1, 1120
      %v1443 = vld [vmem:[%s1442] sm:$0xff]
      %v1444 = vld [vmem:[%s1442 + $0x8] sm:$0xff]
      %v1445 = vld [vmem:[%s1442 + $0x10] sm:$0xff]
      %v1446 = vld [vmem:[%s1442 + $0x18] sm:$0xff]
      %v1447 = vld [vmem:[%s1442 + $0x20] sm:$0xff]
      %v1448 = vld [vmem:[%s1442 + $0x28] sm:$0xff]
      %v1449 = vld [vmem:[%s1442 + $0x30] sm:$0xff]
      %v1450 = vld [vmem:[%s1442 + $0x38] sm:$0xff]
      %v1451 = vld [vmem:[%s1442 + $0x40] sm:$0xff]
      %v1452 = vld [vmem:[%s1442 + $0x48] sm:$0xff]
      %v1453 = vld [vmem:[%s1442 + $0x50] sm:$0xff]
      %v1454 = vld [vmem:[%s1442 + $0x58] sm:$0xff]
      %v1455 = vld [vmem:[%s1442 + $0x60] sm:$0xff]
      %v1456 = vld [vmem:[%s1442 + $0x68] sm:$0xff]
      %v1457 = vld [vmem:[%s1442 + $0x70] sm:$0xff]
      %v1458 = vld [vmem:[%s1442 + $0x78] sm:$0xff]
      %v1459 = vld [vmem:[%s1442 + $0x80] sm:$0xff]
      %v1460 = vld [vmem:[%s1442 + $0x88] sm:$0xff]
      %v1461 = vld [vmem:[%s1442 + $0x90] sm:$0xff]
      %v1462 = vld [vmem:[%s1442 + $0x98] sm:$0xff]
      %v1463 = vsel %vm256, %v1419, 0
      %v1465 = vsel %vm256, %v1425, 0
      %v1467 = vsel %vm256, %v1431, 0
      %v1469 = vsel %vm256, %v1437, 0
      %1471 = vmatprep.subr.mxu0 0.0
      %1472 = vmatpush1.msra.mxu0 %v1458
      %1473 = vmatprep.subr.mxu0 0.0
      %1474 = vmatpush1.msra.mxu0 %v1457
      %1475 = vmatprep.subr.mxu0 0.0
      %1476 = vmatpush1.msra.mxu0 %v1456
      %1477 = vmatprep.subr.mxu0 0.0
      %1478 = vmatpush1.msra.mxu0 %v1455
      %1479 = vmatprep.subr.mxu0 0.0
      %1480 = vmatpush1.msra.mxu0 %v1454
      %1481 = vmatprep.subr.mxu0 0.0
      %1482 = vmatpush1.msra.mxu0 %v1453
      %1483 = vmatprep.subr.mxu0 0.0
      %1484 = vmatpush1.msra.mxu0 %v1452
      %1485 = vmatprep.subr.mxu0 0.0
      %1486 = vmatpush1.msra.mxu0 %v1451
      %1487 = vmatprep.subr.mxu0 0.0
      %1488 = vmatpush1.msra.mxu0 %v1450
      %1489 = vmatprep.subr.mxu0 0.0
      %1490 = vmatpush1.msra.mxu0 %v1449
      %1491 = vmatprep.subr.mxu0 0.0
      %1492 = vmatpush1.msra.mxu0 %v1448
      %1493 = vmatprep.subr.mxu0 0.0
      %1494 = vmatpush1.msra.mxu0 %v1447
      %1495 = vmatprep.subr.mxu0 0.0
      %1496 = vmatpush1.msra.mxu0 %v1446
      %1497 = vmatprep.subr.mxu0 0.0
      %1498 = vmatpush1.msra.mxu0 %v1445
      %1499 = vmatprep.subr.mxu0 0.0
      %1500 = vmatpush1.msra.mxu0 %v1444
      %1501 = vmatprep.subr.mxu0 0.0
      %1502 = vmatpush1.msra.mxu0 %v1443
      %1503 = vmatprep.subr.mxu0 0.0
      %1504 = vmatpush2.msra.mxu0 0.0
      %1505 = vmatprep.subr.mxu0 0.0
      %1506 = vmatpush2.msra.mxu0 0.0
      %1507 = vmatprep.subr.mxu0 0.0
      %1508 = vmatpush2.msra.mxu0 0.0
      %1509 = vmatprep.subr.mxu0 0.0
      %1510 = vmatpush2.msra.mxu0 0.0
      %1511 = vmatprep.subr.mxu0 0.0
      %1512 = vmatpush2.msra.mxu0 0.0
      %1513 = vmatprep.subr.mxu0 0.0
      %1514 = vmatpush2.msra.mxu0 0.0
      %1515 = vmatprep.subr.mxu0 0.0
      %1516 = vmatpush2.msra.mxu0 0.0
      %1517 = vmatprep.subr.mxu0 0.0
      %1518 = vmatpush2.msra.mxu0 0.0
      %1519 = vmatprep.subr.mxu0 0.0
      %1520 = vmatpush2.msra.mxu0 0.0
      %1521 = vmatprep.subr.mxu0 0.0
      %1522 = vmatpush2.msra.mxu0 0.0
      %1523 = vmatprep.subr.mxu0 0.0
      %1524 = vmatpush2.msra.mxu0 0.0
      %1525 = vmatprep.subr.mxu0 0.0
      %1526 = vmatpush2.msra.mxu0 0.0
      %1527 = vmatprep.subr.mxu0 0.0
      %1528 = vmatpush2.msra.mxu0 %v1462
      %1529 = vmatprep.subr.mxu0 0.0
      %1530 = vmatpush2.msra.mxu0 %v1461
      %1531 = vmatprep.subr.mxu0 0.0
      %1532 = vmatpush2.msra.mxu0 %v1460
      %1533 = vmatprep.subr.mxu0 0.0
      %1534 = vmatpush2.msra.mxu0 %v1459
      %1535 = vmatprep.mubr.f32.mxu0 %v1463
      %1536 = vmatmul.mubr.f32.gmra.mxu0 %v1416
      %v1537 = vpop.f32.mrf.mxu0
      %v1538 = vadd.f32 0.0, %v1537
      %v1539 = vpop.f32.mrf.mxu0
      %1540 = vmatprep.mubr.f32.mxu0 %v1465
      %1541 = vmatmul.mubr.f32.gmra.mxu0 %v1422
      %v1542 = vpop.f32.mrf.mxu0
      %v1543 = vadd.f32 0.0, %v1542
      %v1544 = vpop.f32.mrf.mxu0
      %1545 = vmatprep.mubr.f32.mxu0 %v1467
      %1546 = vmatmul.mubr.f32.gmra.mxu0 %v1428
      %v1547 = vpop.f32.mrf.mxu0
      %v1548 = vadd.f32 0.0, %v1547
      %v1549 = vpop.f32.mrf.mxu0
      %1550 = vmatprep.mubr.f32.mxu0 %v1469
      %1551 = vmatmul.mubr.f32.gmra.mxu0 %v1434
      %v1552 = vpop.f32.mrf.mxu0
      %v1553 = vadd.f32 0.0, %v1552
      %v1554 = vpop.f32.mrf.mxu0
      %1555 = vdwg.mxu0
      %v1556 = vld [vmem:[#allocation2] sm:$0xff]
      %v1557 = vld [vmem:[#allocation2 + $0x8] sm:$0xff]
      %v1558 = vld [vmem:[#allocation2 + $0x10] sm:$0xff]
      %v1559 = vld [vmem:[#allocation2 + $0x18] sm:$0xff]
      %v1560 = vadd.f32 %v1556, %v1538
      %v1561 = vadd.f32 %v1557, %v1543
      %v1562 = vadd.f32 %v1558, %v1548
      %v1563 = vadd.f32 %v1559, %v1553
      %1564 = vst [vmem:[#allocation2] sm:$0xff] %v1560
      %1565 = vst [vmem:[#allocation2 + $0x8] sm:$0xff] %v1561
      %1566 = vst [vmem:[#allocation2 + $0x10] sm:$0xff] %v1562
      %1567 = vst [vmem:[#allocation2 + $0x18] sm:$0xff] %v1563
      %v1568 = vld [vmem:[%s1243] sm:$0xfc]
      %v1569 = vld [vmem:[%s1243 + $0x8] sm:$0xfc]
      %v1570 = vld [vmem:[%s1243 + $0x10] sm:$0x3]
      %v1571 = vld [vmem:[%s1243 + $0x18] sm:$0x3]
      %v1572 = vld [vmem:[%s1243 + $0x20] sm:$0xfc]
      %v1573 = vld [vmem:[%s1243 + $0x28] sm:$0xfc]
      %v1574 = vld [vmem:[%s1243 + $0x30] sm:$0x3]
      %v1575 = vld [vmem:[%s1243 + $0x38] sm:$0x3]
      %v1576 = vld [vmem:[%s1243 + $0x40] sm:$0xfc]
      %v1577 = vld [vmem:[%s1243 + $0x48] sm:$0xfc]
      %v1578 = vld [vmem:[%s1243 + $0x50] sm:$0x3]
      %v1579 = vld [vmem:[%s1243 + $0x58] sm:$0x3]
      %v1580 = vld [vmem:[%s1243 + $0x60] sm:$0xfc]
      %v1581 = vld [vmem:[%s1243 + $0x68] sm:$0xfc]
      %v1582 = vld [vmem:[%s1243 + $0x70] sm:$0x3]
      %v1583 = vld [vmem:[%s1243 + $0x78] sm:$0x3]
      %v1600 = vrot.slane %v1568, 2
      %v1601 = vrot.slane %v1570, 2
      %v1602 = vsel %vm577, %v1600, %v1601
      %v1603 = vrot.slane %v1569, 2
      %v1604 = vrot.slane %v1571, 2
      %v1605 = vsel %vm577, %v1603, %v1604
      %v1606 = vrot.slane %v1572, 2
      %v1607 = vrot.slane %v1574, 2
      %v1608 = vsel %vm577, %v1606, %v1607
      %v1609 = vrot.slane %v1573, 2
      %v1610 = vrot.slane %v1575, 2
      %v1611 = vsel %vm577, %v1609, %v1610
      %v1612 = vrot.slane %v1576, 2
      %v1613 = vrot.slane %v1578, 2
      %v1614 = vsel %vm577, %v1612, %v1613
      %v1615 = vrot.slane %v1577, 2
      %v1616 = vrot.slane %v1579, 2
      %v1617 = vsel %vm577, %v1615, %v1616
      %v1618 = vrot.slane %v1580, 2
      %v1619 = vrot.slane %v1582, 2
      %v1620 = vsel %vm577, %v1618, %v1619
      %v1621 = vrot.slane %v1581, 2
      %v1622 = vrot.slane %v1583, 2
      %v1623 = vsel %vm577, %v1621, %v1622
      %s1628 = scalar_lea.vmem %s1, 1280
      %v1629 = vld [vmem:[%s1628] sm:$0xff]
      %v1630 = vld [vmem:[%s1628 + $0x8] sm:$0xff]
      %v1631 = vld [vmem:[%s1628 + $0x10] sm:$0xff]
      %v1632 = vld [vmem:[%s1628 + $0x18] sm:$0xff]
      %v1633 = vld [vmem:[%s1628 + $0x20] sm:$0xff]
      %v1634 = vld [vmem:[%s1628 + $0x28] sm:$0xff]
      %v1635 = vld [vmem:[%s1628 + $0x30] sm:$0xff]
      %v1636 = vld [vmem:[%s1628 + $0x38] sm:$0xff]
      %v1637 = vld [vmem:[%s1628 + $0x40] sm:$0xff]
      %v1638 = vld [vmem:[%s1628 + $0x48] sm:$0xff]
      %v1639 = vld [vmem:[%s1628 + $0x50] sm:$0xff]
      %v1640 = vld [vmem:[%s1628 + $0x58] sm:$0xff]
      %v1641 = vld [vmem:[%s1628 + $0x60] sm:$0xff]
      %v1642 = vld [vmem:[%s1628 + $0x68] sm:$0xff]
      %v1643 = vld [vmem:[%s1628 + $0x70] sm:$0xff]
      %v1644 = vld [vmem:[%s1628 + $0x78] sm:$0xff]
      %v1645 = vld [vmem:[%s1628 + $0x80] sm:$0xff]
      %v1646 = vld [vmem:[%s1628 + $0x88] sm:$0xff]
      %v1647 = vld [vmem:[%s1628 + $0x90] sm:$0xff]
      %v1648 = vld [vmem:[%s1628 + $0x98] sm:$0xff]
      %v1649 = vsel %vm256, %v1605, 0
      %v1651 = vsel %vm256, %v1611, 0
      %v1653 = vsel %vm256, %v1617, 0
      %v1655 = vsel %vm256, %v1623, 0
      %1657 = vmatprep.subr.mxu0 0.0
      %1658 = vmatpush1.msra.mxu0 %v1644
      %1659 = vmatprep.subr.mxu0 0.0
      %1660 = vmatpush1.msra.mxu0 %v1643
      %1661 = vmatprep.subr.mxu0 0.0
      %1662 = vmatpush1.msra.mxu0 %v1642
      %1663 = vmatprep.subr.mxu0 0.0
      %1664 = vmatpush1.msra.mxu0 %v1641
      %1665 = vmatprep.subr.mxu0 0.0
      %1666 = vmatpush1.msra.mxu0 %v1640
      %1667 = vmatprep.subr.mxu0 0.0
      %1668 = vmatpush1.msra.mxu0 %v1639
      %1669 = vmatprep.subr.mxu0 0.0
      %1670 = vmatpush1.msra.mxu0 %v1638
      %1671 = vmatprep.subr.mxu0 0.0
      %1672 = vmatpush1.msra.mxu0 %v1637
      %1673 = vmatprep.subr.mxu0 0.0
      %1674 = vmatpush1.msra.mxu0 %v1636
      %1675 = vmatprep.subr.mxu0 0.0
      %1676 = vmatpush1.msra.mxu0 %v1635
      %1677 = vmatprep.subr.mxu0 0.0
      %1678 = vmatpush1.msra.mxu0 %v1634
      %1679 = vmatprep.subr.mxu0 0.0
      %1680 = vmatpush1.msra.mxu0 %v1633
      %1681 = vmatprep.subr.mxu0 0.0
      %1682 = vmatpush1.msra.mxu0 %v1632
      %1683 = vmatprep.subr.mxu0 0.0
      %1684 = vmatpush1.msra.mxu0 %v1631
      %1685 = vmatprep.subr.mxu0 0.0
      %1686 = vmatpush1.msra.mxu0 %v1630
      %1687 = vmatprep.subr.mxu0 0.0
      %1688 = vmatpush1.msra.mxu0 %v1629
      %1689 = vmatprep.subr.mxu0 0.0
      %1690 = vmatpush2.msra.mxu0 0.0
      %1691 = vmatprep.subr.mxu0 0.0
      %1692 = vmatpush2.msra.mxu0 0.0
      %1693 = vmatprep.subr.mxu0 0.0
      %1694 = vmatpush2.msra.mxu0 0.0
      %1695 = vmatprep.subr.mxu0 0.0
      %1696 = vmatpush2.msra.mxu0 0.0
      %1697 = vmatprep.subr.mxu0 0.0
      %1698 = vmatpush2.msra.mxu0 0.0
      %1699 = vmatprep.subr.mxu0 0.0
      %1700 = vmatpush2.msra.mxu0 0.0
      %1701 = vmatprep.subr.mxu0 0.0
      %1702 = vmatpush2.msra.mxu0 0.0
      %1703 = vmatprep.subr.mxu0 0.0
      %1704 = vmatpush2.msra.mxu0 0.0
      %1705 = vmatprep.subr.mxu0 0.0
      %1706 = vmatpush2.msra.mxu0 0.0
      %1707 = vmatprep.subr.mxu0 0.0
      %1708 = vmatpush2.msra.mxu0 0.0
      %1709 = vmatprep.subr.mxu0 0.0
      %1710 = vmatpush2.msra.mxu0 0.0
      %1711 = vmatprep.subr.mxu0 0.0
      %1712 = vmatpush2.msra.mxu0 0.0
      %1713 = vmatprep.subr.mxu0 0.0
      %1714 = vmatpush2.msra.mxu0 %v1648
      %1715 = vmatprep.subr.mxu0 0.0
      %1716 = vmatpush2.msra.mxu0 %v1647
      %1717 = vmatprep.subr.mxu0 0.0
      %1718 = vmatpush2.msra.mxu0 %v1646
      %1719 = vmatprep.subr.mxu0 0.0
      %1720 = vmatpush2.msra.mxu0 %v1645
      %1721 = vmatprep.mubr.f32.mxu0 %v1649
      %1722 = vmatmul.mubr.f32.gmra.mxu0 %v1602
      %v1723 = vpop.f32.mrf.mxu0
      %v1724 = vadd.f32 0.0, %v1723
      %v1725 = vpop.f32.mrf.mxu0
      %1726 = vmatprep.mubr.f32.mxu0 %v1651
      %1727 = vmatmul.mubr.f32.gmra.mxu0 %v1608
      %v1728 = vpop.f32.mrf.mxu0
      %v1729 = vadd.f32 0.0, %v1728
      %v1730 = vpop.f32.mrf.mxu0
      %1731 = vmatprep.mubr.f32.mxu0 %v1653
      %1732 = vmatmul.mubr.f32.gmra.mxu0 %v1614
      %v1733 = vpop.f32.mrf.mxu0
      %v1734 = vadd.f32 0.0, %v1733
      %v1735 = vpop.f32.mrf.mxu0
      %1736 = vmatprep.mubr.f32.mxu0 %v1655
      %1737 = vmatmul.mubr.f32.gmra.mxu0 %v1620
      %v1738 = vpop.f32.mrf.mxu0
      %v1739 = vadd.f32 0.0, %v1738
      %v1740 = vpop.f32.mrf.mxu0
      %1741 = vdwg.mxu0
      %v1742 = vld [vmem:[#allocation2] sm:$0xff]
      %v1743 = vld [vmem:[#allocation2 + $0x8] sm:$0xff]
      %v1744 = vld [vmem:[#allocation2 + $0x10] sm:$0xff]
      %v1745 = vld [vmem:[#allocation2 + $0x18] sm:$0xff]
      %v1746 = vadd.f32 %v1742, %v1724
      %v1747 = vadd.f32 %v1743, %v1729
      %v1748 = vadd.f32 %v1744, %v1734
      %v1749 = vadd.f32 %v1745, %v1739
      %1750 = vst [vmem:[#allocation2] sm:$0xff] %v1746
      %1751 = vst [vmem:[#allocation2 + $0x8] sm:$0xff] %v1747
      %1752 = vst [vmem:[#allocation2 + $0x10] sm:$0xff] %v1748
      %1753 = vst [vmem:[#allocation2 + $0x18] sm:$0xff] %v1749
      %v1754 = vld [vmem:[#allocation2] sm:$0xff]
      %v1755 = vld [vmem:[#allocation2 + $0x8] sm:$0xff]
      %v1756 = vld [vmem:[#allocation2 + $0x10] sm:$0xff]
      %v1757 = vld [vmem:[#allocation2 + $0x18] sm:$0xff]
      %1758 = vst [vmem:[%s219] sm:$0xff] %v1754
      %1759 = vst [vmem:[%s219 + $0x8] sm:$0xff] %v1755
      %1760 = vst [vmem:[%s219 + $0x10] sm:$0xff] %v1756
      %1761 = vst [vmem:[%s219 + $0x18] sm:$0xff] %v1757
      %v1762 = vadd.f32 %v1754, %v1755
      %v1763 = vadd.f32 %v1762, %v1756
      %v1764 = vadd.f32 %v1763, %v1757
      %v1765 = vrot.slane %v1764, 4
      %v1766 = vadd.f32 %v1764, %v1765
      %v1767 = vrot.slane %v1766, 2
      %v1768 = vadd.f32 %v1766, %v1767
      %v1769 = vrot.slane %v1768, 1
      %v1770 = vadd.f32 %v1768, %v1769
      %v1771 = vmul.f32 %v1754, %v1754
      %v1772 = vmul.f32 %v1755, %v1755
      %v1773 = vmul.f32 %v1756, %v1756
      %v1774 = vmul.f32 %v1757, %v1757
      %v1775 = vadd.f32 %v1771, %v1772
      %v1776 = vadd.f32 %v1775, %v1773
      %v1777 = vadd.f32 %v1776, %v1774
      %v1778 = vrot.slane %v1777, 4
      %v1779 = vadd.f32 %v1777, %v1778
      %v1780 = vrot.slane %v1779, 2
      %v1781 = vadd.f32 %v1779, %v1780
      %v1782 = vrot.slane %v1781, 1
      %v1783 = vadd.f32 %v1781, %v1782
      %vm1784 = vcmask 1040384
      %v1785 = vsel %vm1784, %v1770, %v1783
      %1786 = vst [vmem:[%s227] sm:$0x3] %v1785
      %p1787 = scmp.lt.s32.totalorder %s19, 1
      %s1788 = scalar_select %p1787, %s19, 1
      %p1789 = scmp.lt.s32.totalorder %s20, 1
      %s1790 = scalar_select %p1789, %s20, 1
      %s1791 = smul.addr %s1790, 4
      %s1792 = smul.addr %s1788, 8
      %s1793 = sadd.s32 %s1791, %s1792
      %s1794 = smul.addr %s1793, 8
      %s1795 = scalar_lea.vmem %s2, %s1794
      %p1796 = scmp.lt.s32.totalorder %s19, 1
      %s1797 = scalar_select %p1796, %s19, 1
      %p1798 = scmp.lt.s32.totalorder %s20, 1
      %s1799 = scalar_select %p1798, %s20, 1
      %s1800 = smul.addr %s1797, 2
      %s1801 = sadd.s32 %s1799, %s1800
      %s1802 = smul.addr %s1801, 2
      %s1803 = scalar_lea.vmem %s3, %s1802
      // Predicated region
      $region29: #{resblock_forward.2} parent=27 // pred_check
        %p1804 = pneg %p96
      $region30: #{resblock_forward.2} parent=27 // pred_check_branch
        %1806 = sbr.rel (%p1804) target = $region32
      $region31: #{resblock_forward.2} parent=27 // pred_region
        _
      $region32: #{resblock_forward.2} parent=27 // pred_fallthru
        _
      // Predicated region
      $region33: #{resblock_forward.2} parent=27 // pred_check
        %p1807 = pneg %p124
      $region34: #{resblock_forward.2} parent=27 // pred_check_branch
        %1809 = sbr.rel (%p1807) target = $region36
      $region35: #{resblock_forward.2} parent=27 // pred_region
        _
      $region36: #{resblock_forward.2} parent=27 // pred_fallthru
        _
    $region28: #{resblock_forward.2} parent=5 // pred_fallthru
      _
    %p1810 = scmp.le.s32.totalorder 2, %s10
    // Predicated region
    $region37: #{resblock_forward.2} parent=5 // pred_check
      %p1811 = pneg %p1810
    $region38: #{resblock_forward.2} parent=5 // pred_check_branch
      %1813 = sbr.rel (%p1811) target = $region40
    $region39: #{resblock_forward.2} parent=5 // pred_region
      %s1814 = ssub.s32 %s10, 2
      // Predicated region
      $region41: #{resblock_forward.2} parent=39 // pred_check
        %p1815 = pneg %p102
      $region42: #{resblock_forward.2} parent=39 // pred_check_branch
        %1817 = sbr.rel (%p1815) target = $region44
      $region43: #{resblock_forward.2} parent=39 // pred_region
        %p1818 = scmp.lt.s32.totalorder %s21, 1
        %s1819 = scalar_select %p1818, %s21, 1
        %p1820 = scmp.lt.s32.totalorder %s22, 1
        %s1821 = scalar_select %p1820, %s22, 1
        %s1822 = smul.addr %s1821, 4
        %s1823 = smul.addr %s1819, 8
        %s1824 = sadd.s32 %s1822, %s1823
        %s1825 = smul.addr %s1824, 8
        %s1826 = scalar_lea.vmem %s2, %s1825
      $region44: #{resblock_forward.2} parent=39 // pred_fallthru
        _
      // Predicated region
      $region45: #{resblock_forward.2} parent=39 // pred_check
        %p1827 = pneg %p130
      $region46: #{resblock_forward.2} parent=39 // pred_check_branch
        %1829 = sbr.rel (%p1827) target = $region48
      $region47: #{resblock_forward.2} parent=39 // pred_region
        %p1830 = scmp.lt.s32.totalorder %s21, 1
        %s1831 = scalar_select %p1830, %s21, 1
        %p1832 = scmp.lt.s32.totalorder %s22, 1
        %s1833 = scalar_select %p1832, %s22, 1
        %s1834 = smul.addr %s1831, 2
        %s1835 = sadd.s32 %s1833, %s1834
        %s1836 = smul.addr %s1835, 2
        %s1837 = scalar_lea.vmem %s3, %s1836
      $region48: #{resblock_forward.2} parent=39 // pred_fallthru
        _
    $region40: #{resblock_forward.2} parent=5 // pred_fallthru
      _
  $region6: #{resblock_forward.2} parent=0 // loop_footer
    %s14 = sadd.s32 1, %s10
  $region7: #{resblock_forward.2} parent=0 // loop_footer_branch
    %9 = sbr.rel target = $region3
  $region8: #{resblock_forward.2} parent=0 // loop_exit
    _

// kernel: resblock_forward.3
$region0: #{resblock_forward.3}
  #allocation0 [shape = 'u32[]', space=smem, size = 0x4, offset = 0x4, fixed_abs, tag = 'smem constant byte address 0x4 - core index']
  #allocation1 [shape = 'u32[144,128]{1,0:T(1,128)}', space=vmem, size = 0x12000, scoped, tag = 'internal scratch']
  %s0 = inlined_call_operand.vmem [shape: f32[2,2,32,128], index: 0, kind: input, shape index: {}]
  %s1 = inlined_call_operand.vmem [shape: f32[2,2,32,128], index: 1, kind: input, shape index: {}]
  %s2 = inlined_call_operand.vmem [shape: f32[2,1,128], index: 2, kind: input, shape index: {}]
  %s3 = inlined_call_operand.vmem [shape: f32[2,1,128], index: 3, kind: input, shape index: {}]
  %s4 = inlined_call_operand.vmem [shape: f32[2,2,32,128], index: 4, kind: output, shape index: {}]
  %s5 = sld [smem:[#allocation0]]
  $region49: #{resblock_forward.3} parent=0
    _
  %s7 = ssub.s32 1, %s5
  %s8 = scalar_select 0, %s7, %s5
  loop: start=0, step=1, limit=6
  $region2: #{resblock_forward.3} parent=0 // loop_pre_header
    _
  $region3: #{resblock_forward.3} parent=0 // loop_header
    %s10 = sphi 0, %s14
    %p11 = scmp.ge.s32.totalorder %s10, 6
    %s17 = sphi 0, %s29
    %s18 = sphi 0, %s25
    %s19 = sphi 0, %s17
    %s20 = sphi 0, %s18
    %s21 = sphi 0, %s19
    %s22 = sphi 0, %s20
    %s34 = sphi 0, %s36
    %s37 = sphi 0, %s34
    %s38 = sphi 0, %s37
    %s54 = sphi 0, %s38
    %s62 = sphi 0, %s64
    %s65 = sphi 0, %s62
    %s66 = sphi 0, %s65
    %s82 = sphi 0, %s66
    %s88 = sphi 0, %s90
    %s91 = sphi 0, %s88
    %s92 = sphi 0, %s91
    %s108 = sphi 0, %s92
    %s114 = sphi 0, %s116
    %s117 = sphi 0, %s114
    %s118 = sphi 0, %s117
    %s134 = sphi 0, %s118
    %s142 = sphi 0, %s144
    %s145 = sphi 0, %s142
    %s146 = sphi 0, %s145
    %s162 = sphi 0, %s146
  $region4: #{resblock_forward.3} parent=0 // loop_header_branch
    %13 = sbr.rel (%p11) target = $region8
  $region5: #{resblock_forward.3} parent=0 // loop_body
    %s15 = ssub.s32 %s10, 1
    %s16 = ssub.s32 %s10, 2
    %s23 = sadd.s32 1, %s18
    %p24 = scmp.ge.s32.totalorder %s23, 2
    %s25 = scalar_select %p24, 0, %s23
    %s26 = sadd.s32 1, %s17
    %s27 = scalar_select %p24, %s26, %s17
    %p28 = scmp.ge.s32.totalorder %s27, 2
    %s29 = scalar_select %p28, 0, %s27
    %s30 = ssub.s32 %s17, %s29
    %s31 = ssub.s32 %s18, %s25
    %s32 = sor.u32 %s30, %s31
    %p33 = scmp.eq.s32.totalorder %s32, 0
    %s35 = sadd.s32 %s34, 1
    %s36 = scalar_select %p33, %s34, %s35
    %p39 = pneg %p33
    %p40 = scmp.eq.s32.totalorder %s10, 3
    %p41 = por %p39, %p40
    %p42 = scmp.ne.s32.totalorder %s34, %s37
    %p43 = scmp.eq.s32.totalorder %s10, 0
    %p44 = por %p42, %p43
    %p45 = scmp.ne.s32.totalorder %s34, %s37
    %p46 = scmp.eq.s32.totalorder %s15, 3
    %p47 = por %p45, %p46
    %p48 = scmp.ne.s32.totalorder %s37, %s38
    %p49 = scmp.eq.s32.totalorder %s15, 0
    %p50 = por %p48, %p49
    %p51 = scmp.ne.s32.totalorder %s37, %s38
    %p52 = scmp.eq.s32.totalorder %s16, 3
    %p53 = por %p51, %p52
    %p55 = scmp.ne.s32.totalorder %s38, %s54
    %p56 = scmp.eq.s32.totalorder %s16, 0
    %p57 = por %p55, %p56
    %s58 = ssub.s32 %s17, %s29
    %s59 = ssub.s32 %s18, %s25
    %s60 = sor.u32 %s58, %s59
    %p61 = scmp.eq.s32.totalorder %s60, 0
    %s63 = sadd.s32 %s62, 1
    %s64 = scalar_select %p61, %s62, %s63
    %p67 = pneg %p61
    %p68 = scmp.eq.s32.totalorder %s10, 3
    %p69 = por %p67, %p68
    %p70 = scmp.ne.s32.totalorder %s62, %s65
    %p71 = scmp.eq.s32.totalorder %s10, 0
    %p72 = por %p70, %p71
    %p73 = scmp.ne.s32.totalorder %s62, %s65
    %p74 = scmp.eq.s32.totalorder %s15, 3
    %p75 = por %p73, %p74
    %p76 = scmp.ne.s32.totalorder %s65, %s66
    %p77 = scmp.eq.s32.totalorder %s15, 0
    %p78 = por %p76, %p77
    %p79 = scmp.ne.s32.totalorder %s65, %s66
    %p80 = scmp.eq.s32.totalorder %s16, 3
    %p81 = por %p79, %p80
    %p83 = scmp.ne.s32.totalorder %s66, %s82
    %p84 = scmp.eq.s32.totalorder %s16, 0
    %p85 = por %p83, %p84
    %s86 = ssub.s32 %s17, %s29
    %p87 = scmp.eq.s32.totalorder %s86, 0
    %s89 = sadd.s32 %s88, 1
    %s90 = scalar_select %p87, %s88, %s89
    %p93 = pneg %p87
    %p94 = scmp.eq.s32.totalorder %s10, 3
    %p95 = por %p93, %p94
    %p96 = scmp.ne.s32.totalorder %s88, %s91
    %p97 = scmp.eq.s32.totalorder %s10, 0
    %p98 = por %p96, %p97
    %p99 = scmp.ne.s32.totalorder %s88, %s91
    %p100 = scmp.eq.s32.totalorder %s15, 3
    %p101 = por %p99, %p100
    %p102 = scmp.ne.s32.totalorder %s91, %s92
    %p103 = scmp.eq.s32.totalorder %s15, 0
    %p104 = por %p102, %p103
    %p105 = scmp.ne.s32.totalorder %s91, %s92
    %p106 = scmp.eq.s32.totalorder %s16, 3
    %p107 = por %p105, %p106
    %p109 = scmp.ne.s32.totalorder %s92, %s108
    %p110 = scmp.eq.s32.totalorder %s16, 0
    %p111 = por %p109, %p110
    %s112 = ssub.s32 %s17, %s29
    %p113 = scmp.eq.s32.totalorder %s112, 0
    %s115 = sadd.s32 %s114, 1
    %s116 = scalar_select %p113, %s114, %s115
    %p119 = pneg %p113
    %p120 = scmp.eq.s32.totalorder %s10, 3
    %p121 = por %p119, %p120
    %p122 = scmp.ne.s32.totalorder %s114, %s117
    %p123 = scmp.eq.s32.totalorder %s10, 0
    %p124 = por %p122, %p123
    %p125 = scmp.ne.s32.totalorder %s114, %s117
    %p126 = scmp.eq.s32.totalorder %s15, 3
    %p127 = por %p125, %p126
    %p128 = scmp.ne.s32.totalorder %s117, %s118
    %p129 = scmp.eq.s32.totalorder %s15, 0
    %p130 = por %p128, %p129
    %p131 = scmp.ne.s32.totalorder %s117, %s118
    %p132 = scmp.eq.s32.totalorder %s16, 3
    %p133 = por %p131, %p132
    %p135 = scmp.ne.s32.totalorder %s118, %s134
    %p136 = scmp.eq.s32.totalorder %s16, 0
    %p137 = por %p135, %p136
    %s138 = ssub.s32 %s17, %s29
    %s139 = ssub.s32 %s18, %s25
    %s140 = sor.u32 %s138, %s139
    %p141 = scmp.eq.s32.totalorder %s140, 0
    %s143 = sadd.s32 %s142, 1
    %s144 = scalar_select %p141, %s142, %s143
    %p147 = pneg %p141
    %p148 = scmp.eq.s32.totalorder %s10, 3
    %p149 = por %p147, %p148
    %p150 = scmp.ne.s32.totalorder %s142, %s145
    %p151 = scmp.eq.s32.totalorder %s10, 0
    %p152 = por %p150, %p151
    %p153 = scmp.ne.s32.totalorder %s142, %s145
    %p154 = scmp.eq.s32.totalorder %s15, 3
    %p155 = por %p153, %p154
    %p156 = scmp.ne.s32.totalorder %s145, %s146
    %p157 = scmp.eq.s32.totalorder %s15, 0
    %p158 = por %p156, %p157
    %p159 = scmp.ne.s32.totalorder %s145, %s146
    %p160 = scmp.eq.s32.totalorder %s16, 3
    %p161 = por %p159, %p160
    %p163 = scmp.ne.s32.totalorder %s146, %s162
    %p164 = scmp.eq.s32.totalorder %s16, 0
    %p165 = por %p163, %p164
    %p166 = scmp.le.s32.totalorder 1, %s10
    %p167 = scmp.lt.s32.totalorder %s10, 5
    %p168 = pnand %p166, %p167
    %p169 = pneg %p168
    // Predicated region
    $region9: #{resblock_forward.3} parent=5 // pred_check
      _
    $region10: #{resblock_forward.3} parent=5 // pred_check_branch
      %171 = sbr.rel (%p168) target = $region12
    $region11: #{resblock_forward.3} parent=5 // pred_region
      %s172 = ssub.s32 %s10, 1
    $region12: #{resblock_forward.3} parent=5 // pred_fallthru
      _
    %p173 = scmp.lt.s32.totalorder %s10, 4
    // Predicated region
    $region13: #{resblock_forward.3} parent=5 // pred_check
      %p174 = pneg %p173
    $region14: #{resblock_forward.3} parent=5 // pred_check_branch
      %176 = sbr.rel (%p174) target = $region16
    $region15: #{resblock_forward.3} parent=5 // pred_region
      // Predicated region
      $region17: #{resblock_forward.3} parent=15 // pred_check
        %p177 = pneg %p44
      $region18: #{resblock_forward.3} parent=15 // pred_check_branch
        %179 = sbr.rel (%p177) target = $region20
      $region19: #{resblock_forward.3} parent=15 // pred_region
        %p180 = scmp.lt.s32.totalorder %s17, 1
        %s181 = scalar_select %p180, %s17, 1
        %p182 = scmp.lt.s32.totalorder %s18, 1
        %s183 = scalar_select %p182, %s18, 1
        %s184 = smul.addr %s183, 4
        %s185 = smul.addr %s181, 8
        %s186 = sadd.s32 %s184, %s185
        %s187 = smul.addr %s186, 8
        %s188 = scalar_lea.vmem %s0, %s187
      $region20: #{resblock_forward.3} parent=15 // pred_fallthru
        _
      // Predicated region
      $region21: #{resblock_forward.3} parent=15 // pred_check
        %p189 = pneg %p72
      $region22: #{resblock_forward.3} parent=15 // pred_check_branch
        %191 = sbr.rel (%p189) target = $region24
      $region23: #{resblock_forward.3} parent=15 // pred_region
        %p192 = scmp.lt.s32.totalorder %s17, 1
        %s193 = scalar_select %p192, %s17, 1
        %p194 = scmp.lt.s32.totalorder %s18, 1
        %s195 = scalar_select %p194, %s18, 1
        %s196 = smul.addr %s195, 4
        %s197 = smul.addr %s193, 8
        %s198 = sadd.s32 %s196, %s197
        %s199 = smul.addr %s198, 8
        %s200 = scalar_lea.vmem %s1, %s199
      $region24: #{resblock_forward.3} parent=15 // pred_fallthru
        _
      // Predicated region
      $region25: #{resblock_forward.3} parent=15 // pred_check
        %p201 = pneg %p98
      $region26: #{resblock_forward.3} parent=15 // pred_check_branch
        %203 = sbr.rel (%p201) target = $region28
      $region27: #{resblock_forward.3} parent=15 // pred_region
        %p204 = scmp.lt.s32.totalorder %s17, 1
        %s205 = scalar_select %p204, %s17, 1
        %s206 = scalar_lea.vmem %s2, %s205
      $region28: #{resblock_forward.3} parent=15 // pred_fallthru
        _
      // Predicated region
      $region29: #{resblock_forward.3} parent=15 // pred_check
        %p207 = pneg %p124
      $region30: #{resblock_forward.3} parent=15 // pred_check_branch
        %209 = sbr.rel (%p207) target = $region32
      $region31: #{resblock_forward.3} parent=15 // pred_region
        %p210 = scmp.lt.s32.totalorder %s17, 1
        %s211 = scalar_select %p210, %s17, 1
        %s212 = scalar_lea.vmem %s3, %s211
      $region32: #{resblock_forward.3} parent=15 // pred_fallthru
        _
    $region16: #{resblock_forward.3} parent=5 // pred_fallthru
      _
    %p213 = scmp.le.s32.totalorder 1, %s10
    %p214 = scmp.lt.s32.totalorder %s10, 5
    %p215 = pnand %p213, %p214
    %p216 = pneg %p215
    // Predicated region
    $region33: #{resblock_forward.3} parent=5 // pred_check
      _
    $region34: #{resblock_forward.3} parent=5 // pred_check_branch
      %218 = sbr.rel (%p215) target = $region36
    $region35: #{resblock_forward.3} parent=5 // pred_region
      %s219 = ssub.s32 %s10, 1
      %p220 = scmp.lt.s32.totalorder %s19, 1
      %s221 = scalar_select %p220, %s19, 1
      %p222 = scmp.lt.s32.totalorder %s20, 1
      %s223 = scalar_select %p222, %s20, 1
      %s224 = smul.addr %s223, 4
      %s225 = smul.addr %s221, 8
      %s226 = sadd.s32 %s224, %s225
      %s227 = smul.addr %s226, 8
      %s228 = scalar_lea.vmem %s0, %s227
      %p229 = pneg %p50
      %p230 = pneg %p47
      %p231 = scmp.lt.s32.totalorder %s19, 1
      %s232 = scalar_select %p231, %s19, 1
      %p233 = scmp.lt.s32.totalorder %s20, 1
      %s234 = scalar_select %p233, %s20, 1
      %s235 = smul.addr %s234, 4
      %s236 = smul.addr %s232, 8
      %s237 = sadd.s32 %s235, %s236
      %s238 = smul.addr %s237, 8
      %s239 = scalar_lea.vmem %s1, %s238
      %p240 = pneg %p78
      %p241 = pneg %p75
      %p242 = scmp.lt.s32.totalorder %s19, 1
      %s243 = scalar_select %p242, %s19, 1
      %s244 = scalar_lea.vmem %s2, %s243
      %p245 = pneg %p104
      %p246 = pneg %p101
      %p247 = scmp.lt.s32.totalorder %s19, 1
      %s248 = scalar_select %p247, %s19, 1
      %s249 = scalar_lea.vmem %s3, %s248
      %p250 = pneg %p130
      %p251 = pneg %p127
      %p252 = pneg %p158
      %p253 = pneg %p155
      %p254 = scmp.lt.s32.totalorder %s19, 1
      %s255 = scalar_select %p254, %s19, 1
      %p256 = scmp.lt.s32.totalorder %s20, 1
      %s257 = scalar_select %p256, %s20, 1
      %s258 = smul.addr %s257, 4
      %s259 = smul.addr %s255, 8
      %s260 = sadd.s32 %s258, %s259
      %s261 = smul.addr %s260, 8
      %s262 = scalar_lea.vmem %s4, %s261
      %p263 = scmp.lt.s32.totalorder %s19, 1
      %s264 = scalar_select %p263, %s19, 1
      %p265 = scmp.lt.s32.totalorder %s20, 1
      %s266 = scalar_select %p265, %s20, 1
      %s267 = smul.addr %s266, 4
      %s268 = smul.addr %s264, 8
      %s269 = sadd.s32 %s267, %s268
      %s270 = smul.addr %s269, 8
      %s271 = scalar_lea.vmem %s0, %s270
      %p272 = scmp.lt.s32.totalorder %s19, 1
      %s273 = scalar_select %p272, %s19, 1
      %p274 = scmp.lt.s32.totalorder %s20, 1
      %s275 = scalar_select %p274, %s20, 1
      %s276 = smul.addr %s275, 4
      %s277 = smul.addr %s273, 8
      %s278 = sadd.s32 %s276, %s277
      %s279 = smul.addr %s278, 8
      %s280 = scalar_lea.vmem %s1, %s279
      %p281 = scmp.lt.s32.totalorder %s19, 1
      %s282 = scalar_select %p281, %s19, 1
      %s283 = scalar_lea.vmem %s2, %s282
      %p284 = scmp.lt.s32.totalorder %s19, 1
      %s285 = scalar_select %p284, %s19, 1
      %s286 = scalar_lea.vmem %s3, %s285
      %p287 = scmp.lt.s32.totalorder %s19, 1
      %s288 = scalar_select %p287, %s19, 1
      %p289 = scmp.lt.s32.totalorder %s20, 1
      %s290 = scalar_select %p289, %s20, 1
      %s291 = smul.addr %s290, 4
      %s292 = smul.addr %s288, 8
      %s293 = sadd.s32 %s291, %s292
      %s294 = smul.addr %s293, 8
      %s295 = scalar_lea.vmem %s4, %s294
      %v296 = vld [vmem:[%s271] sm:$0xff]
      %v297 = vld [vmem:[%s271 + $0x8] sm:$0xff]
      %v298 = vld [vmem:[%s271 + $0x10] sm:$0xff]
      %v299 = vld [vmem:[%s271 + $0x18] sm:$0xff]
      %v300 = vld [vmem:[%s283] sm:$0x1]
      %v302 = vlaneseq
      %v303 = vshrl.u32 %v302, 7
      %v304 = vsub.s32 0, %v303
      %v305 = vrot.slane %v300, %v304
      %v307 = vmul.f32 %v296, %v305
      %v308 = vmul.f32 %v297, %v305
      %v309 = vmul.f32 %v298, %v305
      %v310 = vmul.f32 %v299, %v305
      %v311 = vld [vmem:[%s286] sm:$0x1]
      %v313 = vlaneseq
      %v314 = vshrl.u32 %v313, 7
      %v315 = vsub.s32 0, %v314
      %v316 = vrot.slane %v311, %v315
      %v318 = vadd.f32 %v307, %v316
      %v319 = vadd.f32 %v308, %v316
      %v320 = vadd.f32 %v309, %v316
      %v321 = vadd.f32 %v310, %v316
      %v322 = vld [vmem:[%s280] sm:$0xff]
      %v323 = vld [vmem:[%s280 + $0x8] sm:$0xff]
      %v324 = vld [vmem:[%s280 + $0x10] sm:$0xff]
      %v325 = vld [vmem:[%s280 + $0x18] sm:$0xff]
      %v326 = vadd.f32 %v318, %v322
      %v327 = vadd.f32 %v319, %v323
      %v328 = vadd.f32 %v320, %v324
      %v329 = vadd.f32 %v321, %v325
      %v330 = vmax.f32 %v326, 0.0
      %v331 = vmax.f32 %v327, 0.0
      %v332 = vmax.f32 %v328, 0.0
      %v333 = vmax.f32 %v329, 0.0
      %334 = vst [vmem:[%s295] sm:$0xff] %v330
      %335 = vst [vmem:[%s295 + $0x8] sm:$0xff] %v331
      %336 = vst [vmem:[%s295 + $0x10] sm:$0xff] %v332
      %337 = vst [vmem:[%s295 + $0x18] sm:$0xff] %v333
      %p338 = scmp.lt.s32.totalorder %s19, 1
      %s339 = scalar_select %p338, %s19, 1
      %p340 = scmp.lt.s32.totalorder %s20, 1
      %s341 = scalar_select %p340, %s20, 1
      %s342 = smul.addr %s341, 4
      %s343 = smul.addr %s339, 8
      %s344 = sadd.s32 %s342, %s343
      %s345 = smul.addr %s344, 8
      %s346 = scalar_lea.vmem %s4, %s345
      // Predicated region
      $region37: #{resblock_forward.3} parent=35 // pred_check
        %p347 = pneg %p155
      $region38: #{resblock_forward.3} parent=35 // pred_check_branch
        %349 = sbr.rel (%p347) target = $region40
      $region39: #{resblock_forward.3} parent=35 // pred_region
        _
      $region40: #{resblock_forward.3} parent=35 // pred_fallthru
        _
    $region36: #{resblock_forward.3} parent=5 // pred_fallthru
      _
    %p350 = scmp.le.s32.totalorder 2, %s10
    // Predicated region
    $region41: #{resblock_forward.3} parent=5 // pred_check
      %p351 = pneg %p350
    $region42: #{resblock_forward.3} parent=5 // pred_check_branch
      %353 = sbr.rel (%p351) target = $region44
    $region43: #{resblock_forward.3} parent=5 // pred_region
      %s354 = ssub.s32 %s10, 2
      // Predicated region
      $region45: #{resblock_forward.3} parent=43 // pred_check
        %p355 = pneg %p161
      $region46: #{resblock_forward.3} parent=43 // pred_check_branch
        %357 = sbr.rel (%p355) target = $region48
      $region47: #{resblock_forward.3} parent=43 // pred_region
        %p358 = scmp.lt.s32.totalorder %s21, 1
        %s359 = scalar_select %p358, %s21, 1
        %p360 = scmp.lt.s32.totalorder %s22, 1
        %s361 = scalar_select %p360, %s22, 1
        %s362 = smul.addr %s361, 4
        %s363 = smul.addr %s359, 8
        %s364 = sadd.s32 %s362, %s363
        %s365 = smul.addr %s364, 8
        %s366 = scalar_lea.vmem %s4, %s365
      $region48: #{resblock_forward.3} parent=43 // pred_fallthru
        _
    $region44: #{resblock_forward.3} parent=5 // pred_fallthru
      _
  $region6: #{resblock_forward.3} parent=0 // loop_footer
    %s14 = sadd.s32 1, %s10
  $region7: #{resblock_forward.3} parent=0 // loop_footer_branch
    %9 = sbr.rel target = $region3
  $region8: #{resblock_forward.3} parent=0 // loop_exit
    _

</llo_original>
